<compile_context>
chip_gen: v5e
topology: v5e:2x2
jax: 0.10.0
libtpu: 0.0.40
codegen_flags: <defaults>
</compile_context>

<pallas_src>
import functools

import jax
import jax.numpy as jnp
import numpy as np
from jax.experimental import pallas as pl
from jax.experimental.pallas import tpu as pltpu

FP8_MAX = 448.0      # float8_e4m3fn max
MIN_AMAX = 1e-12     # avoid div-by-zero for all-zero tokens
FUSE_M_THRESHOLD = 128   # decode-shaped calls fuse quant into the matmul


# ---------------------------------------------------------------------------
# Small helpers
# ---------------------------------------------------------------------------
def _pick_tile(dim, candidates):
    for c in candidates:
        if dim % c == 0:
            return c
    return dim  # block == full array dim is always legal


def _round_up(v, m):
    return ((v + m - 1) // m) * m


def _vmem_cap_bytes():
    try:
        info = pltpu.get_tpu_info()
        return int(getattr(info, "vmem_capacity_bytes", 64 * 1024 * 1024))
    except Exception:
        return 64 * 1024 * 1024   # v7x (smallest per-TC VMEM)


def _vmem_limit(bytes_needed):
    # Scoped limit sized from the real tile footprint, with headroom for
    # compiler-internal scratch, clamped to 3/4 of physical VMEM.
    cap = _vmem_cap_bytes()
    return int(min(max(bytes_needed + (8 << 20), 32 << 20), (cap * 3) // 4))


def _mxu_native_fp8():
    # v7x MXU is fp8-native; earlier generations need the bf16 operand path.
    try:
        kind = jax.devices()[0].device_kind.lower().replace(" ", "")
    except Exception:
        return False
    return ("v7" in kind) or ("tpu7" in kind)


def _weight_block_spec(K, tn, index_map):
    # Deeper pipelining on the weight input hides the (K, tn) DMA burst at
    # each j boundary. Fall back to default double-buffering if pipeline_mode
    # / pl.Buffered is unavailable in this JAX version.
    try:
        return pl.BlockSpec((K, tn), index_map, pipeline_mode=pl.Buffered(3))
    except Exception:
        return pl.BlockSpec((K, tn), index_map)


# ---------------------------------------------------------------------------
# Kernel 1: dynamic per-token fp8 quantization (prefill / large-M path)
# (ops.scaled_fp8_quant with input_scale=None, use_per_token_if_dynamic=True)
# ---------------------------------------------------------------------------
def _quant_kernel(x_ref, q_ref, xs_ref):
    x = x_ref[...]                                            # (tq, K), input dtype
    # abs/max is exact in bf16, so keep the big tile in its native dtype and
    # only promote the (tq, 1) amax to f32 (halves VPU work on v6e/v7x).
    amax = jnp.max(jnp.abs(x), axis=-1, keepdims=True).astype(jnp.float32)
    scale = jnp.maximum(amax, MIN_AMAX) / FP8_MAX             # (tq, 1) f32
    # Exact division (per-row broadcast) for bit-parity with scaled_fp8_quant.
    q = jnp.clip(x / scale, -FP8_MAX, FP8_MAX)                # promotes to f32
    q_ref[...] = q.astype(jnp.float8_e4m3fn)
    xs_ref[...] = scale


def _quantize_per_token(x, *, tq):
    M, K = x.shape
    itemsize = x.dtype.itemsize
    need = 2 * (tq * K * itemsize + tq * K + tq * 4)
    cost = pl.CostEstimate(
        flops=4 * M * K, transcendentals=0,
        bytes_accessed=M * K * itemsize + M * K + M * 4)
    return pl.pallas_call(
        _quant_kernel,
        out_shape=(jax.ShapeDtypeStruct((M, K), jnp.float8_e4m3fn),
                   jax.ShapeDtypeStruct((M, 1), jnp.float32)),
        grid_spec=pltpu.PrefetchScalarGridSpec(
            num_scalar_prefetch=0,
            grid=(M // tq,),
            in_specs=[pl.BlockSpec((tq, K), lambda i: (i, 0))],
            out_specs=[pl.BlockSpec((tq, K), lambda i: (i, 0)),
                       pl.BlockSpec((tq, 1), lambda i: (i, 0))],
        ),
        compiler_params=pltpu.CompilerParams(
            dimension_semantics=("parallel",),
            vmem_limit_bytes=_vmem_limit(need)),
        cost_estimate=cost,
    )(x)


# ---------------------------------------------------------------------------
# Kernel 2: scaled matmul (ops.cutlass_scaled_mm), weight-resident tiling
# ---------------------------------------------------------------------------
def _scaled_mm_kernel(q_ref, w_ref, xs_ref, ws_ref, *rest,
                      native_fp8, has_bias, cache_weight):
    # q_ref:  (tm, K)  fp8 quantized activations
    # w_ref:  (K, tn)  fp8 quantized weight (resident across inner i axis)
    # xs_ref: (tm, 1)  f32 per-token scale
    # ws_ref: (1, tn)  f32 per-output-channel weight scale
    # b_ref:  (1, tn)  bias (input dtype), only if has_bias
    # o_ref:  (tm, tn) output (input dtype)
    idx = 0
    if has_bias:
        b_ref = rest[idx]; idx += 1
    o_ref = rest[idx]; idx += 1

    if native_fp8:
        # v7x: fp8-native MXU — feed fp8 operands directly, accumulate in f32.
        acc = jnp.dot(q_ref[...], w_ref[...],
                      preferred_element_type=jnp.float32)
    elif cache_weight:
        # v5e/v6e: fp8 values are exactly representable in bf16. Cast the
        # resident weight tile once per j (inner i axis is "arbitrary", so it
        # always starts at 0 on each core) and reuse the VMEM-cached bf16 copy.
        w_bf16 = rest[idx]

        @pl.when(pl.program_id(1) == 0)
        def _():
            w_bf16[...] = w_ref[...].astype(jnp.bfloat16)

        acc = jnp.dot(q_ref[...].astype(jnp.bfloat16), w_bf16[...],
                      preferred_element_type=jnp.float32)
    else:
        acc = jnp.dot(q_ref[...].astype(jnp.bfloat16),
                      w_ref[...].astype(jnp.bfloat16),
                      preferred_element_type=jnp.float32)

    out = (acc * xs_ref[...]) * ws_ref[...]                   # fused epilogue
    if has_bias:
        out = out + b_ref[...].astype(jnp.float32)
    o_ref[...] = out.astype(o_ref.dtype)


def _fp8_linear_tiled(x, qweight, weight_scale, qbias, *, native_fp8):
    M, K = x.shape
    N = qweight.shape[1]
    out_dtype = x.dtype
    out_itemsize = jnp.dtype(out_dtype).itemsize
    has_bias = qbias is not None

    # --- M tiling; pad ragged M instead of one giant block -----------------
    tm = None
    for c in (256, 128, 64, 32, 16, 8):
        if M % c == 0:
            tm = c
            break
    Mp = M
    if tm is None:
        tm = 128
        Mp = _round_up(M, tm)
        x = jnp.pad(x, ((0, Mp - M), (0, 0)))

    # Larger tn for big M cuts activation re-reads (M*K per j tile).
    tn = _pick_tile(N, (1024, 512, 256, 128) if Mp >= 512 else (512, 256, 128))
    # TODO(synk): ragged N (not a multiple of 128) falls back to a full-N
    # block; pad/mask N if such shapes ever appear in practice.

    # --- Step 1: per-token quantization (own, larger, memory-bound tile) ---
    tq = _pick_tile(Mp, (1024, 512, 256, 128, 64, 32, 16, 8))
    q, x_scale = _quantize_per_token(x, tq=tq)

    # --- Step 2: weight-resident matmul: j (over N) outer, i (over M) inner,
    # so the (K, tn) weight block is DMA'd from HBM only once per j. ---------
    n_j, n_i = N // tn, Mp // tm
    cache_weight = (not native_fp8) and (n_i > 1)

    kernel = functools.partial(_scaled_mm_kernel, native_fp8=native_fp8,
                               has_bias=has_bias, cache_weight=cache_weight)

    in_specs = [
        pl.BlockSpec((tm, K), lambda j, i: (i, 0)),           # q (fp8)
        _weight_block_spec(K, tn, lambda j, i: (0, j)),       # weight (fp8)
        pl.BlockSpec((tm, 1), lambda j, i: (i, 0)),           # x_scale
        pl.BlockSpec((1, tn), lambda j, i: (0, j)),           # weight_scale
    ]
    args = [q, qweight, x_scale, weight_scale]
    if has_bias:
        in_specs.append(pl.BlockSpec((1, tn), lambda j, i: (0, j)))
        args.append(qbias)

    scratch_shapes = []
    if cache_weight:
        scratch_shapes.append(pltpu.VMEM((K, tn), jnp.bfloat16))

    need = (2 * tm * K                       # q tiles (fp8, double-buffered)
            + 3 * K * tn                     # weight tiles (fp8, Buffered(3))
            + 2 * (tm * 4 + tn * 4)          # scales
            + (2 * tn * out_itemsize if has_bias else 0)
            + 2 * tm * tn * out_itemsize     # output tiles
            + (2 * K * tn if cache_weight else 0))
    cost = pl.CostEstimate(
        flops=2 * Mp * N * K, transcendentals=0,
        bytes_accessed=int(Mp * K * n_j      # fp8 activations re-read per j
                           + K * N           # fp8 weight read once
                           + Mp * 4 * n_j + N * 4
                           + (N * out_itemsize if has_bias else 0)
                           + Mp * N * out_itemsize))

    out = pl.pallas_call(
        kernel,
        out_shape=jax.ShapeDtypeStruct((Mp, N), out_dtype),
        grid_spec=pltpu.PrefetchScalarGridSpec(
            num_scalar_prefetch=0,
            grid=(n_j, n_i),
            in_specs=in_specs,
            out_specs=pl.BlockSpec((tm, tn), lambda j, i: (i, j)),
            scratch_shapes=scratch_shapes,
        ),
        compiler_params=pltpu.CompilerParams(
            dimension_semantics=("parallel",
                                 "arbitrary" if cache_weight else "parallel"),
            vmem_limit_bytes=_vmem_limit(need)),
        cost_estimate=cost,
    )(*args)
    return out[:M] if Mp != M else out


# ---------------------------------------------------------------------------
# Kernel 3: fused quant + scaled matmul for decode-shaped calls (M <= 128).
# Single pallas_call; x stays resident in VMEM (its block index is constant),
# so the cheap per-token quant recompute per j step hides under the weight DMA.
# ---------------------------------------------------------------------------
def _fused_kernel(x_ref, w_ref, ws_ref, *rest, native_fp8, has_bias):
    if has_bias:
        b_ref, o_ref = rest
    else:
        (o_ref,) = rest

    x = x_ref[...]                                            # (M, K), resident
    amax = jnp.max(jnp.abs(x), axis=-1, keepdims=True).astype(jnp.float32)
    scale = jnp.maximum(amax, MIN_AMAX) / FP8_MAX             # (M, 1)
    q = jnp.clip(x / scale, -FP8_MAX, FP8_MAX).astype(jnp.float8_e4m3fn)

    if native_fp8:
        acc = jnp.dot(q, w_ref[...], preferred_element_type=jnp.float32)
    else:
        acc = jnp.dot(q.astype(jnp.bfloat16), w_ref[...].astype(jnp.bfloat16),
                      preferred_element_type=jnp.float32)

    out = (acc * scale) * ws_ref[...]
    if has_bias:
        out = out + b_ref[...].astype(jnp.float32)
    o_ref[...] = out.astype(o_ref.dtype)


def _fp8_linear_fused(x, qweight, weight_scale, qbias, *, native_fp8):
    M, K = x.shape
    N = qweight.shape[1]
    out_dtype = x.dtype
    out_itemsize = jnp.dtype(out_dtype).itemsize
    has_bias = qbias is not None

    # Keep N // tn >= 2 where possible so megacore (v7x) can split over j.
    tn = _pick_tile(N, (512, 256, 128))
    n_j = N // tn

    kernel = functools.partial(_fused_kernel, native_fp8=native_fp8,
                               has_bias=has_bias)
    in_specs = [
        pl.BlockSpec((M, K), lambda j: (0, 0)),               # x, resident
        pl.BlockSpec((K, tn), lambda j: (0, j)),              # weight streams
        pl.BlockSpec((1, tn), lambda j: (0, j)),              # weight_scale
    ]
    args = [x, qweight, weight_scale]
    if has_bias:
        in_specs.append(pl.BlockSpec((1, tn), lambda j: (0, j)))
        args.append(qbias)

    itemsize_x = x.dtype.itemsize
    need = (2 * M * K * itemsize_x + 2 * K * tn + 2 * tn * 4
            + (2 * tn * itemsize_x if has_bias else 0)
            + 2 * M * tn * out_itemsize)
    cost = pl.CostEstimate(
        flops=2 * M * N * K + 6 * M * K * n_j, transcendentals=0,
        bytes_accessed=int(M * K * itemsize_x + K * N + N * 4
                           + (N * itemsize_x if has_bias else 0)
                           + M * N * out_itemsize))

    return pl.pallas_call(
        kernel,
        out_shape=jax.ShapeDtypeStruct((M, N), out_dtype),
        grid_spec=pltpu.PrefetchScalarGridSpec(
            num_scalar_prefetch=0,
            grid=(n_j,),
            in_specs=in_specs,
            out_specs=pl.BlockSpec((M, tn), lambda j: (0, j)),
        ),
        compiler_params=pltpu.CompilerParams(
            dimension_semantics=("parallel",),
            vmem_limit_bytes=_vmem_limit(need)),
        cost_estimate=cost,
    )(*args)


# ---------------------------------------------------------------------------
# Public entry point (apply_fp8_linear equivalent)
# ---------------------------------------------------------------------------
def fp8_linear(x, qweight, weight_scale, qbias=None, *,
               input_scale=None, input_scale_ub=None, native_fp8=None):
    """x: [M, K]; qweight: [K, N] fp8; weight_scale: [1, N] f32; qbias: [1, N]."""
    # TODO(synk): static input_scale / input_scale_ub path of scaled_fp8_quant
    # not implemented; the module path exercised here is dynamic per-token.
    del input_scale, input_scale_ub

    M, K = x.shape
    K2, N = qweight.shape
    assert K == K2
    if native_fp8 is None:
        native_fp8 = _mxu_native_fp8()

    weight_scale = jnp.asarray(weight_scale, jnp.float32).reshape(1, -1)
    if weight_scale.shape[1] == 1 and N != 1:
        weight_scale = jnp.broadcast_to(weight_scale, (1, N))
    if qbias is not None:
        qbias = jnp.asarray(qbias).reshape(1, -1).astype(x.dtype)

    impl = _fp8_linear_fused if M <= FUSE_M_THRESHOLD else _fp8_linear_tiled
    if native_fp8:
        try:
            return impl(x, qweight, weight_scale, qbias, native_fp8=True)
        except Exception:
            # TODO(synk): fp8-direct MXU path rejected by this Mosaic build;
            # fall back to the (always-correct) bf16 operand path.
            pass
    return impl(x, qweight, weight_scale, qbias, native_fp8=False)


# ---------------------------------------------------------------------------
# Reference + self-test
# ---------------------------------------------------------------------------
def _reference_fp8_linear(x, qweight_t, weight_scale_1n, qbias):
    xf = x.astype(jnp.float32)
    amax = jnp.max(jnp.abs(xf), axis=-1, keepdims=True)
    x_scale = jnp.maximum(amax, MIN_AMAX) / FP8_MAX
    qx = jnp.clip(xf / x_scale, -FP8_MAX, FP8_MAX).astype(jnp.float8_e4m3fn)
    out = (qx.astype(jnp.float32) @ qweight_t.astype(jnp.float32)) \
        * x_scale * weight_scale_1n
    if qbias is not None:
        out = out + qbias.astype(jnp.float32)
    return out.astype(x.dtype)


if __name__ == "__main__":
    key = jax.random.PRNGKey(0)

    def make_case(case_key, M, K, N, with_bias):
        kx, kw, kb = jax.random.split(case_key, 3)
        x = jax.random.normal(kx, (M, K), dtype=jnp.float32).astype(jnp.bfloat16)
        w = jax.random.normal(kw, (N, K), dtype=jnp.float32) * 0.05  # torch [out, in]
        # --- Fp8Linear.__init__ equivalent: per-output-channel fp8 weight
        # quantization, then weight.t() and weight_scale.view(1, -1).float() ---
        w_amax = jnp.max(jnp.abs(w), axis=1, keepdims=True)          # (N, 1)
        weight_scale = w_amax / FP8_MAX
        qweight_t = jnp.clip(w / weight_scale, -FP8_MAX, FP8_MAX).T.astype(
            jnp.float8_e4m3fn)                                        # (K, N)
        weight_scale_1n = weight_scale.reshape(1, -1).astype(jnp.float32)
        qbias = None
        if with_bias:
            bias = (jax.random.normal(kb, (N,), jnp.float32) * 0.1).astype(jnp.bfloat16)
            qbias = bias.reshape(1, -1)
        return x, qweight_t, weight_scale_1n, qbias

    cases = [
        (16, 128, 256, True),    # decode-shaped -> fused path, with bias
        (8, 128, 256, False),    # decode-shaped -> fused path, no bias
        (256, 128, 512, True),   # prefill -> tiled path, with bias
        (256, 128, 512, False),  # prefill -> tiled path, no bias
        (512, 128, 512, True),   # prefill, M//tm > 1 -> bf16 weight cache path
        (250, 128, 256, True),   # ragged M -> padded tiled path
    ]
    case_keys = jax.random.split(key, len(cases))
    for ck, (M, K, N, wb) in zip(case_keys, cases):
        x, qw, ws, qb = make_case(ck, M, K, N, wb)
        out = jax.block_until_ready(fp8_linear(x, qw, ws, qb))
        ref = _reference_fp8_linear(x, qw, ws, qb)
        np.testing.assert_allclose(np.asarray(out, dtype=np.float32),
                                   np.asarray(ref, dtype=np.float32),
                                   rtol=5e-2, atol=5e-2)
    print("KERNEL_OK")
</pallas_src>

<mosaic_0001>
module attributes {stable_mosaic.version = 11 : i64} {
  func.func @_fused_kernel(%arg0: i32, %arg1: memref<16x128xbf16, #tpu.memory_space<vmem>>, %arg2: memref<128x256xf8E4M3FN, #tpu.memory_space<vmem>>, %arg3: memref<1x256xf32, #tpu.memory_space<vmem>>, %arg4: memref<1x256xbf16, #tpu.memory_space<vmem>>, %arg5: memref<16x256xbf16, #tpu.memory_space<vmem>>) attributes {dimension_semantics = [#tpu.dimension_semantics<parallel>], iteration_bounds = array<i64: 1>, scalar_prefetch = 0 : i64, scratch_operands = 0 : i64, tpu.core_type = #tpu.core_type<tc>, window_params = [{pipeline_mode = #tpu.pipeline_mode<synchronous>, transform_indices = @transform_0, window_bounds = array<i64: 16, 128>}, {transform_indices = @transform_1, window_bounds = array<i64: 128, 256>}, {transform_indices = @transform_2, window_bounds = array<i64: 1, 256>}, {transform_indices = @transform_3, window_bounds = array<i64: 1, 256>}, {transform_indices = @transform_4, window_bounds = array<i64: 16, 256>}]} {
    %c0 = arith.constant 0 : index
    %c0_0 = arith.constant 0 : index
    %0 = vector.load %arg1[%c0, %c0_0] : memref<16x128xbf16, #tpu.memory_space<vmem>>, vector<16x128xbf16>
    %1 = math.absf %0 : vector<16x128xbf16>
    %cst = arith.constant dense<0xFF80> : vector<16xbf16>
    %2 = vector.multi_reduction <maximumf>, %1, %cst [1] : vector<16x128xbf16> to vector<16xbf16>
    %3 = vector.shape_cast %2 : vector<16xbf16> to vector<16x1xbf16>
    %4 = arith.extf %3 : vector<16x1xbf16> to vector<16x1xf32>
    %cst_1 = arith.constant 9.99999996E-13 : f32
    %5 = vector.broadcast %cst_1 : f32 to vector<16x1xf32>
    %6 = arith.maximumf %4, %5 : vector<16x1xf32>
    %cst_2 = arith.constant 4.480000e+02 : f32
    %7 = vector.broadcast %cst_2 : f32 to vector<16x1xf32>
    %8 = arith.divf %6, %7 : vector<16x1xf32>
    %9 = arith.extf %0 : vector<16x128xbf16> to vector<16x128xf32>
    %10 = vector.broadcast %8 : vector<16x1xf32> to vector<16x128xf32>
    %11 = arith.divf %9, %10 : vector<16x128xf32>
    %cst_3 = arith.constant -4.480000e+02 : f32
    %cst_4 = arith.constant 4.480000e+02 : f32
    %12 = vector.broadcast %cst_3 : f32 to vector<16x128xf32>
    %13 = arith.maximumf %12, %11 : vector<16x128xf32>
    %14 = vector.broadcast %cst_4 : f32 to vector<16x128xf32>
    %15 = arith.minimumf %14, %13 : vector<16x128xf32>
    %16 = arith.truncf %15 : vector<16x128xf32> to vector<16x128xf8E4M3FN>
    %17 = arith.extf %16 : vector<16x128xf8E4M3FN> to vector<16x128xbf16>
    %c0_5 = arith.constant 0 : index
    %c0_6 = arith.constant 0 : index
    %18 = vector.load %arg2[%c0_5, %c0_6] : memref<128x256xf8E4M3FN, #tpu.memory_space<vmem>>, vector<128x256xf8E4M3FN>
    %19 = arith.extf %18 : vector<128x256xf8E4M3FN> to vector<128x256xbf16>
    %cst_7 = arith.constant dense<0.000000e+00> : vector<16x256xf32>
    %20 = tpu.matmul %17, %19, %cst_7 {dimension_numbers = #tpu.dot_dimension_numbers<[1], [0], [0], [1], [0, 0, 1, 1], [], []>} : vector<16x128xbf16>, vector<128x256xbf16>, vector<16x256xf32> -> vector<16x256xf32>
    %21 = vector.broadcast %8 : vector<16x1xf32> to vector<16x256xf32>
    %22 = arith.mulf %20, %21 : vector<16x256xf32>
    %c0_8 = arith.constant 0 : index
    %c0_9 = arith.constant 0 : index
    %23 = vector.load %arg3[%c0_8, %c0_9] : memref<1x256xf32, #tpu.memory_space<vmem>>, vector<1x256xf32>
    %24 = vector.broadcast %23 : vector<1x256xf32> to vector<16x256xf32>
    %25 = arith.mulf %22, %24 : vector<16x256xf32>
    %c0_10 = arith.constant 0 : index
    %c0_11 = arith.constant 0 : index
    %26 = vector.load %arg4[%c0_10, %c0_11] : memref<1x256xbf16, #tpu.memory_space<vmem>>, vector<1x256xbf16>
    %27 = arith.extf %26 : vector<1x256xbf16> to vector<1x256xf32>
    %28 = vector.broadcast %27 : vector<1x256xf32> to vector<16x256xf32>
    %29 = arith.addf %25, %28 : vector<16x256xf32>
    %30 = arith.truncf %29 : vector<16x256xf32> to vector<16x256xbf16>
    %c0_12 = arith.constant 0 : index
    %c0_13 = arith.constant 0 : index
    %31 = vector.load %arg5[%c0_12, %c0_13] : memref<16x256xbf16, #tpu.memory_space<vmem>>, vector<16x256xbf16>
    tpu.vector_store %arg5[%c0_12, %c0_13], %30 {strides = array<i32>} : memref<16x256xbf16, #tpu.memory_space<vmem>>, vector<16x256xbf16>,
    return
  }
  func.func @transform_0(%arg0: i32) -> (i32, i32) {
    %c0_i32 = arith.constant 0 : i32
    %c0_i32_0 = arith.constant 0 : i32
    %c0_i32_1 = arith.constant 0 : i32
    return %c0_i32, %c0_i32_0 : i32, i32
  }
  func.func @transform_1(%arg0: i32) -> (i32, i32) {
    %c0_i32 = arith.constant 0 : i32
    %c0_i32_0 = arith.constant 0 : i32
    return %c0_i32, %arg0 : i32, i32
  }
  func.func @transform_2(%arg0: i32) -> (i32, i32) {
    %c0_i32 = arith.constant 0 : i32
    %c0_i32_0 = arith.constant 0 : i32
    return %c0_i32, %arg0 : i32, i32
  }
  func.func @transform_3(%arg0: i32) -> (i32, i32) {
    %c0_i32 = arith.constant 0 : i32
    %c0_i32_0 = arith.constant 0 : i32
    return %c0_i32, %arg0 : i32, i32
  }
  func.func @transform_4(%arg0: i32) -> (i32, i32) {
    %c0_i32 = arith.constant 0 : i32
    %c0_i32_0 = arith.constant 0 : i32
    return %c0_i32, %arg0 : i32, i32
  }
}

</mosaic_0001>

<llo_original>
// kernel: tpu_custom_call.1
$region0: #{tpu_custom_call.1}
  #allocation0 [shape = 'u32[]', space=smem, size = 0x4, offset = 0x4, fixed_abs, tag = 'smem constant byte address 0x4 - core index']
  #allocation1 [shape = 'u32[72,128]{1,0:T(1,128)}', space=vmem, size = 0x9000, scoped, tag = 'internal scratch']
  %s0 = inlined_call_operand.hbm [shape: bf16[16,128], index: 0, kind: input, shape index: {}]
  %s1 = inlined_call_operand.hbm [shape: f8e4m3fn[128,256], index: 1, kind: input, shape index: {}]
  %s2 = inlined_call_operand.hbm [shape: f32[1,256], index: 2, kind: input, shape index: {}]
  %s3 = inlined_call_operand.vmem [shape: bf16[1,256], index: 3, kind: input, shape index: {}]
  %s4 = inlined_call_operand.hbm [shape: bf16[16,256], index: 4, kind: output, shape index: {}]
  %s5 = sld [smem:[#allocation0]]
  $region72: #{tpu_custom_call.1} parent=0
    _
  %s7 = ssub.s32 1, %s5
  %s8 = scalar_select 0, %s7, %s5
  $region1: #{tpu_custom_call.1} parent=0
    #allocation2 [shape = 'u8[4096]{0}', space=vmem, size = 0x1000, scoped, tag = 'input window, operand 0, single buffered']
    #allocation3 [shape = 's32[1]{0}', space=sflag, size = 0x4, scoped, tag = 'scoped memory for tpu_custom_call.1']
    #allocation4 [shape = 's32[1]{0}', space=sflag, size = 0x4, scoped, tag = 'scoped memory for tpu_custom_call.1']
    #allocation5 [shape = 'u8[32768]{0}', space=vmem, size = 0x8000, scoped, tag = 'input window, operand 1, single buffered']
    #allocation6 [shape = 's32[1]{0}', space=sflag, size = 0x4, scoped, tag = 'scoped memory for tpu_custom_call.1']
    #allocation7 [shape = 'u8[1024]{0}', space=vmem, size = 0x400, scoped, tag = 'input window, operand 2, single buffered']
    #allocation8 [shape = 'u8[8192]{0}', space=vmem, size = 0x2000, scoped, tag = 'output window, operand 0, single buffered']
    %9 = vsyncpa [#allocation3], 0
    %10 = vsyncpa [#allocation6], 0
    %11 = vsyncpa [#allocation4], 0
    // Predicated region
    $region2: #{tpu_custom_call.1} parent=1 // pred_check
      _
    $region3: #{tpu_custom_call.1} parent=1 // pred_check_branch
      %13 = sbr.rel (0) target = $region5
    $region4: #{tpu_custom_call.1} parent=1 // pred_region
      %15 = vsyncadd [#allocation3], 0
      %s16 = sshll.u32 %s0, 4
      %s17 = int_to_ptr.hbm [resolvable:$true] %s16
      %s18 = sshll.u32 [#allocation2], 4
      %s19 = int_to_ptr.vmem [resolvable:$true] %s18
      %24 = dma.hbm_to_vmem [thread:$0]  %s17, 128, %s19, [#allocation3], 64, 64, 4
    $region5: #{tpu_custom_call.1} parent=1 // pred_fallthru
      _
    // Predicated region
    $region6: #{tpu_custom_call.1} parent=1 // pred_check
      _
    $region7: #{tpu_custom_call.1} parent=1 // pred_check_branch
      %26 = sbr.rel (0) target = $region9
    $region8: #{tpu_custom_call.1} parent=1 // pred_region
      %28 = vsyncadd [#allocation6], 0
      %s29 = sshll.u32 %s1, 4
      %s30 = int_to_ptr.hbm [resolvable:$true] %s29
      %s31 = sshll.u32 [#allocation5], 4
      %s32 = int_to_ptr.vmem [resolvable:$true] %s31
      %37 = dma.hbm_to_vmem [thread:$0]  %s30, 1024, %s32, [#allocation6], 256, 256, 16
    $region9: #{tpu_custom_call.1} parent=1 // pred_fallthru
      _
    // Predicated region
    $region10: #{tpu_custom_call.1} parent=1 // pred_check
      _
    $region11: #{tpu_custom_call.1} parent=1 // pred_check_branch
      %39 = sbr.rel (0) target = $region13
    $region12: #{tpu_custom_call.1} parent=1 // pred_region
      %41 = vsyncadd [#allocation6], 0
      %s43 = sshll.u32 %s2, 4
      %s44 = int_to_ptr.hbm [resolvable:$true] %s43
      %s45 = sshll.u32 [#allocation7], 4
      %s46 = int_to_ptr.vmem [resolvable:$true] %s45
      %48 = dma.hbm_to_vmem [thread:$0]  %s44, 32, %s46, [#allocation6]
    $region13: #{tpu_custom_call.1} parent=1 // pred_fallthru
      _
    // Predicated region
    $region14: #{tpu_custom_call.1} parent=1 // pred_check
      _
    $region15: #{tpu_custom_call.1} parent=1 // pred_check_branch
      %50 = sbr.rel (0) target = $region17
    $region16: #{tpu_custom_call.1} parent=1 // pred_region
      _
    $region17: #{tpu_custom_call.1} parent=1 // pred_fallthru
      _
    // Predicated region
    $region18: #{tpu_custom_call.1} parent=1 // pred_check
      _
    $region19: #{tpu_custom_call.1} parent=1 // pred_check_branch
      %52 = sbr.rel (0) target = $region21
    $region20: #{tpu_custom_call.1} parent=1 // pred_region
      %54 = dma.done [#allocation3], 128
    $region21: #{tpu_custom_call.1} parent=1 // pred_fallthru
      _
    // Predicated region
    $region22: #{tpu_custom_call.1} parent=1 // pred_check
      _
    $region23: #{tpu_custom_call.1} parent=1 // pred_check_branch
      %56 = sbr.rel (0) target = $region25
    $region24: #{tpu_custom_call.1} parent=1 // pred_region
      %58 = dma.done [#allocation6], 1024
    $region25: #{tpu_custom_call.1} parent=1 // pred_fallthru
      _
    // Predicated region
    $region26: #{tpu_custom_call.1} parent=1 // pred_check
      _
    $region27: #{tpu_custom_call.1} parent=1 // pred_check_branch
      %60 = sbr.rel (0) target = $region29
    $region28: #{tpu_custom_call.1} parent=1 // pred_region
      %62 = dma.done [#allocation6], 32
    $region29: #{tpu_custom_call.1} parent=1 // pred_fallthru
      _
    %v63 = vld [vmem:[#allocation2] sm:$0xf]
    %v64 = vld [vmem:[#allocation2 + $0x4] sm:$0xf]
    %v65 = vand.u32 2147450879, %v63
    %v66 = vand.u32 2147450879, %v64
    %v67 = vunpack.c.l.bf16 %v65
    %v68 = vunpack.c.l.bf16 %v66
    %69 = vmax.xlane.f32.xlu0 %v67
    %v70 = vpop.xlane.xlu0 %69
    %71 = vmax.xlane.f32.xlu0 %v68
    %v72 = vpop.xlane.xlu0 %71
    %v73 = vpack.c.bf16 %v70, %v70
    %v74 = vpack.c.bf16 %v72, %v72
    %v75 = vunpack.c.l.bf16 %v73
    %v76 = vunpack.c.l.bf16 %v74
    %v77 = vmax.f32 %v75, 1e-12
    %v78 = vmax.f32 %v76, 1e-12
    %v79 = vrcp.pop 448.0
    %v80 = vmul.f32 448.0, %v79
    %v81 = vsub.f32 1.0, %v80
    %v82 = vmul.f32 %v79, %v81
    %v83 = vadd.f32 %v79, %v82
    %vm84 = vweird.f32 %v79
    %v85 = vsel %vm84, %v79, %v83
    %v86 = vmul.f32 %v77, %v85
    %v87 = vmul.f32 %v78, %v85
    %v88 = vunpack.c.l.bf16 %v63
    %v89 = vunpack.c.l.bf16 %v64
    %v90 = vrcp.pop %v86
    %v91 = vmul.f32 %v86, %v90
    %v92 = vsub.f32 1.0, %v91
    %v93 = vmul.f32 %v90, %v92
    %v94 = vadd.f32 %v90, %v93
    %vm95 = vweird.f32 %v86
    %vm96 = vweird.f32 %v90
    %vm97 = vmor %vm95, %vm96
    %v98 = vsel %vm97, %v90, %v94
    %v99 = vand.u32 2147483647, %v86
    %vm100 = vcmp.eq.f32.partialorder %v99, 8.507059e+37
    %v101 = vand.u32 %v86, 2147483648
    %v102 = vor.u32 1.1754944e-38, %v101
    %v103 = vsel %vm100, %v102, %v98
    %v104 = vmul.f32 %v88, %v103
    %v105 = vrcp.pop %v87
    %v106 = vmul.f32 %v87, %v105
    %v107 = vsub.f32 1.0, %v106
    %v108 = vmul.f32 %v105, %v107
    %v109 = vadd.f32 %v105, %v108
    %vm110 = vweird.f32 %v87
    %vm111 = vweird.f32 %v105
    %vm112 = vmor %vm110, %vm111
    %v113 = vsel %vm112, %v105, %v109
    %v114 = vand.u32 2147483647, %v87
    %vm115 = vcmp.eq.f32.partialorder %v114, 8.507059e+37
    %v116 = vand.u32 %v87, 2147483648
    %v117 = vor.u32 1.1754944e-38, %v116
    %v118 = vsel %vm115, %v117, %v113
    %v119 = vmul.f32 %v89, %v118
    %v120 = vmax.f32 %v104, -448.0
    %v121 = vmax.f32 %v119, -448.0
    %v122 = vmin.f32 %v120, 448.0
    %v123 = vmin.f32 %v121, 448.0
    %v124 = vand.u32 2147483647, %v122
    %v125 = vmul.f32 %v122, 0.0625
    %v126 = vcvt.f32.f8e4m3b11 %v125
    %vm127 = vweird.f32 %v122
    %v128 = vsel %vm127, 127, %v126
    %v129 = vshrl.u32 %v122, 24
    %v130 = vand.u32 %v129, 128
    %vm131 = vcmp.le.f32.partialorder %v124, 0.0009765625
    %v132 = vsel %vm131, %v130, %v128
    %v133 = vand.u32 2147483647, %v123
    %v134 = vmul.f32 %v123, 0.0625
    %v135 = vcvt.f32.f8e4m3b11 %v134
    %vm136 = vweird.f32 %v123
    %v137 = vsel %vm136, 127, %v135
    %v138 = vshrl.u32 %v123, 24
    %v139 = vand.u32 %v138, 128
    %vm140 = vcmp.le.f32.partialorder %v133, 0.0009765625
    %v141 = vsel %vm140, %v139, %v137
    %v142 = vpack.c.b16 %v141, %v132
    %v143 = vpack.c.b8 %v142, %v142
    $region30: #{tpu_custom_call.1} parent=1
      #allocation9 [shape = 'u8[4096]{0}', space=vmem, size = 0x1000, scoped, tag = 'scoped memory for tpu_custom_call.1']
      %145 = vst [vmem:[#allocation9] sm:$0xff] %v143
      %v146 = vld [vmem:[#allocation9] sm:$0x3]
      %v147 = vunpack.c.0.f8e4m3b11 %v146
      %v148 = vunpack.c.1.f8e4m3b11 %v146
      %v149 = vunpack.c.2.f8e4m3b11 %v146
      %v150 = vunpack.c.3.f8e4m3b11 %v146
      %v151 = vand.u32 2147483647, %v147
      %vm152 = vcmp.gt.f32.partialorder %v151, 29.0
      %vm153 = vcmp.ne.f32.partialorder %v147, %v147
      %v154 = vmul.f32 %v147, 16.0
      %v155 = vsel %vm153, -0.0, %v154
      %v156 = vsel %vm152, nan, %v155
      %v157 = vand.u32 2147483647, %v148
      %vm158 = vcmp.gt.f32.partialorder %v157, 29.0
      %vm159 = vcmp.ne.f32.partialorder %v148, %v148
      %v160 = vmul.f32 %v148, 16.0
      %v161 = vsel %vm159, -0.0, %v160
      %v162 = vsel %vm158, nan, %v161
      %v163 = vand.u32 2147483647, %v149
      %vm164 = vcmp.gt.f32.partialorder %v163, 29.0
      %vm165 = vcmp.ne.f32.partialorder %v149, %v149
      %v166 = vmul.f32 %v149, 16.0
      %v167 = vsel %vm165, -0.0, %v166
      %v168 = vsel %vm164, nan, %v167
      %v169 = vand.u32 2147483647, %v150
      %vm170 = vcmp.gt.f32.partialorder %v169, 29.0
      %vm171 = vcmp.ne.f32.partialorder %v150, %v150
      %v172 = vmul.f32 %v150, 16.0
      %v173 = vsel %vm171, -0.0, %v172
      %v174 = vsel %vm170, nan, %v173
    $region31: #{tpu_custom_call.1} parent=1
      #allocation10 [shape = 'u8[4096]{0}', space=vmem, size = 0x1000, scoped, tag = 'scoped memory for tpu_custom_call.1']
      %175 = vst [vmem:[#allocation10] sm:$0xff] %v143
      %s176 = scalar_lea.vmem [#allocation10], 2
      %v177 = vld [vmem:[%s176] sm:$0x3]
      %v178 = vunpack.c.0.f8e4m3b11 %v177
      %v179 = vunpack.c.1.f8e4m3b11 %v177
      %v180 = vunpack.c.2.f8e4m3b11 %v177
      %v181 = vunpack.c.3.f8e4m3b11 %v177
      %v182 = vand.u32 2147483647, %v178
      %vm183 = vcmp.gt.f32.partialorder %v182, 29.0
      %vm184 = vcmp.ne.f32.partialorder %v178, %v178
      %v185 = vmul.f32 %v178, 16.0
      %v186 = vsel %vm184, -0.0, %v185
      %v187 = vsel %vm183, nan, %v186
      %v188 = vand.u32 2147483647, %v179
      %vm189 = vcmp.gt.f32.partialorder %v188, 29.0
      %vm190 = vcmp.ne.f32.partialorder %v179, %v179
      %v191 = vmul.f32 %v179, 16.0
      %v192 = vsel %vm190, -0.0, %v191
      %v193 = vsel %vm189, nan, %v192
      %v194 = vand.u32 2147483647, %v180
      %vm195 = vcmp.gt.f32.partialorder %v194, 29.0
      %vm196 = vcmp.ne.f32.partialorder %v180, %v180
      %v197 = vmul.f32 %v180, 16.0
      %v198 = vsel %vm196, -0.0, %v197
      %v199 = vsel %vm195, nan, %v198
      %v200 = vand.u32 2147483647, %v181
      %vm201 = vcmp.gt.f32.partialorder %v200, 29.0
      %vm202 = vcmp.ne.f32.partialorder %v181, %v181
      %v203 = vmul.f32 %v181, 16.0
      %v204 = vsel %vm202, -0.0, %v203
      %v205 = vsel %vm201, nan, %v204
    %v206 = vpack.c.bf16 %v187, %v156
    %v207 = vld [vmem:[#allocation5] sm:$0xff]
    %v208 = vld [vmem:[#allocation5 + $0x8] sm:$0xff]
    %v209 = vld [vmem:[#allocation5 + $0x10] sm:$0xff]
    %v210 = vld [vmem:[#allocation5 + $0x18] sm:$0xff]
    %v211 = vld [vmem:[#allocation5 + $0x20] sm:$0xff]
    %v212 = vld [vmem:[#allocation5 + $0x28] sm:$0xff]
    %v213 = vld [vmem:[#allocation5 + $0x30] sm:$0xff]
    %v214 = vld [vmem:[#allocation5 + $0x38] sm:$0xff]
    $region32: #{tpu_custom_call.1} parent=1
      #allocation11 [shape = 'u8[4096]{0}', space=vmem, size = 0x1000, scoped, tag = 'scoped memory for tpu_custom_call.1']
      %215 = vst [vmem:[#allocation11] sm:$0xff] %v207
      %v216 = vld [vmem:[#allocation11] sm:$0x3]
      %v217 = vunpack.c.0.f8e4m3b11 %v216
      %v218 = vunpack.c.1.f8e4m3b11 %v216
      %v219 = vunpack.c.2.f8e4m3b11 %v216
      %v220 = vunpack.c.3.f8e4m3b11 %v216
      %v221 = vand.u32 2147483647, %v217
      %vm222 = vcmp.gt.f32.partialorder %v221, 29.0
      %vm223 = vcmp.ne.f32.partialorder %v217, %v217
      %v224 = vmul.f32 %v217, 16.0
      %v225 = vsel %vm223, -0.0, %v224
      %v226 = vsel %vm222, nan, %v225
      %v227 = vand.u32 2147483647, %v218
      %vm228 = vcmp.gt.f32.partialorder %v227, 29.0
      %vm229 = vcmp.ne.f32.partialorder %v218, %v218
      %v230 = vmul.f32 %v218, 16.0
      %v231 = vsel %vm229, -0.0, %v230
      %v232 = vsel %vm228, nan, %v231
      %v233 = vand.u32 2147483647, %v219
      %vm234 = vcmp.gt.f32.partialorder %v233, 29.0
      %vm235 = vcmp.ne.f32.partialorder %v219, %v219
      %v236 = vmul.f32 %v219, 16.0
      %v237 = vsel %vm235, -0.0, %v236
      %v238 = vsel %vm234, nan, %v237
      %v239 = vand.u32 2147483647, %v220
      %vm240 = vcmp.gt.f32.partialorder %v239, 29.0
      %vm241 = vcmp.ne.f32.partialorder %v220, %v220
      %v242 = vmul.f32 %v220, 16.0
      %v243 = vsel %vm241, -0.0, %v242
      %v244 = vsel %vm240, nan, %v243
    $region33: #{tpu_custom_call.1} parent=1
      #allocation12 [shape = 'u8[4096]{0}', space=vmem, size = 0x1000, scoped, tag = 'scoped memory for tpu_custom_call.1']
      %245 = vst [vmem:[#allocation12] sm:$0xff] %v208
      %v246 = vld [vmem:[#allocation12] sm:$0x3]
      %v247 = vunpack.c.0.f8e4m3b11 %v246
      %v248 = vunpack.c.1.f8e4m3b11 %v246
      %v249 = vunpack.c.2.f8e4m3b11 %v246
      %v250 = vunpack.c.3.f8e4m3b11 %v246
      %v251 = vand.u32 2147483647, %v247
      %vm252 = vcmp.gt.f32.partialorder %v251, 29.0
      %vm253 = vcmp.ne.f32.partialorder %v247, %v247
      %v254 = vmul.f32 %v247, 16.0
      %v255 = vsel %vm253, -0.0, %v254
      %v256 = vsel %vm252, nan, %v255
      %v257 = vand.u32 2147483647, %v248
      %vm258 = vcmp.gt.f32.partialorder %v257, 29.0
      %vm259 = vcmp.ne.f32.partialorder %v248, %v248
      %v260 = vmul.f32 %v248, 16.0
      %v261 = vsel %vm259, -0.0, %v260
      %v262 = vsel %vm258, nan, %v261
      %v263 = vand.u32 2147483647, %v249
      %vm264 = vcmp.gt.f32.partialorder %v263, 29.0
      %vm265 = vcmp.ne.f32.partialorder %v249, %v249
      %v266 = vmul.f32 %v249, 16.0
      %v267 = vsel %vm265, -0.0, %v266
      %v268 = vsel %vm264, nan, %v267
      %v269 = vand.u32 2147483647, %v250
      %vm270 = vcmp.gt.f32.partialorder %v269, 29.0
      %vm271 = vcmp.ne.f32.partialorder %v250, %v250
      %v272 = vmul.f32 %v250, 16.0
      %v273 = vsel %vm271, -0.0, %v272
      %v274 = vsel %vm270, nan, %v273
    $region34: #{tpu_custom_call.1} parent=1
      #allocation13 [shape = 'u8[4096]{0}', space=vmem, size = 0x1000, scoped, tag = 'scoped memory for tpu_custom_call.1']
      %275 = vst [vmem:[#allocation13] sm:$0xff] %v207
      %s276 = scalar_lea.vmem [#allocation13], 2
      %v277 = vld [vmem:[%s276] sm:$0x3]
      %v278 = vunpack.c.0.f8e4m3b11 %v277
      %v279 = vunpack.c.1.f8e4m3b11 %v277
      %v280 = vunpack.c.2.f8e4m3b11 %v277
      %v281 = vunpack.c.3.f8e4m3b11 %v277
      %v282 = vand.u32 2147483647, %v278
      %vm283 = vcmp.gt.f32.partialorder %v282, 29.0
      %vm284 = vcmp.ne.f32.partialorder %v278, %v278
      %v285 = vmul.f32 %v278, 16.0
      %v286 = vsel %vm284, -0.0, %v285
      %v287 = vsel %vm283, nan, %v286
      %v288 = vand.u32 2147483647, %v279
      %vm289 = vcmp.gt.f32.partialorder %v288, 29.0
      %vm290 = vcmp.ne.f32.partialorder %v279, %v279
      %v291 = vmul.f32 %v279, 16.0
      %v292 = vsel %vm290, -0.0, %v291
      %v293 = vsel %vm289, nan, %v292
      %v294 = vand.u32 2147483647, %v280
      %vm295 = vcmp.gt.f32.partialorder %v294, 29.0
      %vm296 = vcmp.ne.f32.partialorder %v280, %v280
      %v297 = vmul.f32 %v280, 16.0
      %v298 = vsel %vm296, -0.0, %v297
      %v299 = vsel %vm295, nan, %v298
      %v300 = vand.u32 2147483647, %v281
      %vm301 = vcmp.gt.f32.partialorder %v300, 29.0
      %vm302 = vcmp.ne.f32.partialorder %v281, %v281
      %v303 = vmul.f32 %v281, 16.0
      %v304 = vsel %vm302, -0.0, %v303
      %v305 = vsel %vm301, nan, %v304
    $region35: #{tpu_custom_call.1} parent=1
      #allocation14 [shape = 'u8[4096]{0}', space=vmem, size = 0x1000, scoped, tag = 'scoped memory for tpu_custom_call.1']
      %306 = vst [vmem:[#allocation14] sm:$0xff] %v208
      %s307 = scalar_lea.vmem [#allocation14], 2
      %v308 = vld [vmem:[%s307] sm:$0x3]
      %v309 = vunpack.c.0.f8e4m3b11 %v308
      %v310 = vunpack.c.1.f8e4m3b11 %v308
      %v311 = vunpack.c.2.f8e4m3b11 %v308
      %v312 = vunpack.c.3.f8e4m3b11 %v308
      %v313 = vand.u32 2147483647, %v309
      %vm314 = vcmp.gt.f32.partialorder %v313, 29.0
      %vm315 = vcmp.ne.f32.partialorder %v309, %v309
      %v316 = vmul.f32 %v309, 16.0
      %v317 = vsel %vm315, -0.0, %v316
      %v318 = vsel %vm314, nan, %v317
      %v319 = vand.u32 2147483647, %v310
      %vm320 = vcmp.gt.f32.partialorder %v319, 29.0
      %vm321 = vcmp.ne.f32.partialorder %v310, %v310
      %v322 = vmul.f32 %v310, 16.0
      %v323 = vsel %vm321, -0.0, %v322
      %v324 = vsel %vm320, nan, %v323
      %v325 = vand.u32 2147483647, %v311
      %vm326 = vcmp.gt.f32.partialorder %v325, 29.0
      %vm327 = vcmp.ne.f32.partialorder %v311, %v311
      %v328 = vmul.f32 %v311, 16.0
      %v329 = vsel %vm327, -0.0, %v328
      %v330 = vsel %vm326, nan, %v329
      %v331 = vand.u32 2147483647, %v312
      %vm332 = vcmp.gt.f32.partialorder %v331, 29.0
      %vm333 = vcmp.ne.f32.partialorder %v312, %v312
      %v334 = vmul.f32 %v312, 16.0
      %v335 = vsel %vm333, -0.0, %v334
      %v336 = vsel %vm332, nan, %v335
    $region36: #{tpu_custom_call.1} parent=1
      #allocation15 [shape = 'u8[4096]{0}', space=vmem, size = 0x1000, scoped, tag = 'scoped memory for tpu_custom_call.1']
      %337 = vst [vmem:[#allocation15] sm:$0xff] %v207
      %s338 = scalar_lea.vmem [#allocation15], 4
      %v339 = vld [vmem:[%s338] sm:$0x3]
      %v340 = vunpack.c.0.f8e4m3b11 %v339
      %v341 = vunpack.c.1.f8e4m3b11 %v339
      %v342 = vunpack.c.2.f8e4m3b11 %v339
      %v343 = vunpack.c.3.f8e4m3b11 %v339
      %v344 = vand.u32 2147483647, %v340
      %vm345 = vcmp.gt.f32.partialorder %v344, 29.0
      %vm346 = vcmp.ne.f32.partialorder %v340, %v340
      %v347 = vmul.f32 %v340, 16.0
      %v348 = vsel %vm346, -0.0, %v347
      %v349 = vsel %vm345, nan, %v348
      %v350 = vand.u32 2147483647, %v341
      %vm351 = vcmp.gt.f32.partialorder %v350, 29.0
      %vm352 = vcmp.ne.f32.partialorder %v341, %v341
      %v353 = vmul.f32 %v341, 16.0
      %v354 = vsel %vm352, -0.0, %v353
      %v355 = vsel %vm351, nan, %v354
      %v356 = vand.u32 2147483647, %v342
      %vm357 = vcmp.gt.f32.partialorder %v356, 29.0
      %vm358 = vcmp.ne.f32.partialorder %v342, %v342
      %v359 = vmul.f32 %v342, 16.0
      %v360 = vsel %vm358, -0.0, %v359
      %v361 = vsel %vm357, nan, %v360
      %v362 = vand.u32 2147483647, %v343
      %vm363 = vcmp.gt.f32.partialorder %v362, 29.0
      %vm364 = vcmp.ne.f32.partialorder %v343, %v343
      %v365 = vmul.f32 %v343, 16.0
      %v366 = vsel %vm364, -0.0, %v365
      %v367 = vsel %vm363, nan, %v366
    $region37: #{tpu_custom_call.1} parent=1
      #allocation16 [shape = 'u8[4096]{0}', space=vmem, size = 0x1000, scoped, tag = 'scoped memory for tpu_custom_call.1']
      %368 = vst [vmem:[#allocation16] sm:$0xff] %v208
      %s369 = scalar_lea.vmem [#allocation16], 4
      %v370 = vld [vmem:[%s369] sm:$0x3]
      %v371 = vunpack.c.0.f8e4m3b11 %v370
      %v372 = vunpack.c.1.f8e4m3b11 %v370
      %v373 = vunpack.c.2.f8e4m3b11 %v370
      %v374 = vunpack.c.3.f8e4m3b11 %v370
      %v375 = vand.u32 2147483647, %v371
      %vm376 = vcmp.gt.f32.partialorder %v375, 29.0
      %vm377 = vcmp.ne.f32.partialorder %v371, %v371
      %v378 = vmul.f32 %v371, 16.0
      %v379 = vsel %vm377, -0.0, %v378
      %v380 = vsel %vm376, nan, %v379
      %v381 = vand.u32 2147483647, %v372
      %vm382 = vcmp.gt.f32.partialorder %v381, 29.0
      %vm383 = vcmp.ne.f32.partialorder %v372, %v372
      %v384 = vmul.f32 %v372, 16.0
      %v385 = vsel %vm383, -0.0, %v384
      %v386 = vsel %vm382, nan, %v385
      %v387 = vand.u32 2147483647, %v373
      %vm388 = vcmp.gt.f32.partialorder %v387, 29.0
      %vm389 = vcmp.ne.f32.partialorder %v373, %v373
      %v390 = vmul.f32 %v373, 16.0
      %v391 = vsel %vm389, -0.0, %v390
      %v392 = vsel %vm388, nan, %v391
      %v393 = vand.u32 2147483647, %v374
      %vm394 = vcmp.gt.f32.partialorder %v393, 29.0
      %vm395 = vcmp.ne.f32.partialorder %v374, %v374
      %v396 = vmul.f32 %v374, 16.0
      %v397 = vsel %vm395, -0.0, %v396
      %v398 = vsel %vm394, nan, %v397
    $region38: #{tpu_custom_call.1} parent=1
      #allocation17 [shape = 'u8[4096]{0}', space=vmem, size = 0x1000, scoped, tag = 'scoped memory for tpu_custom_call.1']
      %399 = vst [vmem:[#allocation17] sm:$0xff] %v207
      %s400 = scalar_lea.vmem [#allocation17], 6
      %v401 = vld [vmem:[%s400] sm:$0x3]
      %v402 = vunpack.c.0.f8e4m3b11 %v401
      %v403 = vunpack.c.1.f8e4m3b11 %v401
      %v404 = vunpack.c.2.f8e4m3b11 %v401
      %v405 = vunpack.c.3.f8e4m3b11 %v401
      %v406 = vand.u32 2147483647, %v402
      %vm407 = vcmp.gt.f32.partialorder %v406, 29.0
      %vm408 = vcmp.ne.f32.partialorder %v402, %v402
      %v409 = vmul.f32 %v402, 16.0
      %v410 = vsel %vm408, -0.0, %v409
      %v411 = vsel %vm407, nan, %v410
      %v412 = vand.u32 2147483647, %v403
      %vm413 = vcmp.gt.f32.partialorder %v412, 29.0
      %vm414 = vcmp.ne.f32.partialorder %v403, %v403
      %v415 = vmul.f32 %v403, 16.0
      %v416 = vsel %vm414, -0.0, %v415
      %v417 = vsel %vm413, nan, %v416
      %v418 = vand.u32 2147483647, %v404
      %vm419 = vcmp.gt.f32.partialorder %v418, 29.0
      %vm420 = vcmp.ne.f32.partialorder %v404, %v404
      %v421 = vmul.f32 %v404, 16.0
      %v422 = vsel %vm420, -0.0, %v421
      %v423 = vsel %vm419, nan, %v422
      %v424 = vand.u32 2147483647, %v405
      %vm425 = vcmp.gt.f32.partialorder %v424, 29.0
      %vm426 = vcmp.ne.f32.partialorder %v405, %v405
      %v427 = vmul.f32 %v405, 16.0
      %v428 = vsel %vm426, -0.0, %v427
      %v429 = vsel %vm425, nan, %v428
    $region39: #{tpu_custom_call.1} parent=1
      #allocation18 [shape = 'u8[4096]{0}', space=vmem, size = 0x1000, scoped, tag = 'scoped memory for tpu_custom_call.1']
      %430 = vst [vmem:[#allocation18] sm:$0xff] %v208
      %s431 = scalar_lea.vmem [#allocation18], 6
      %v432 = vld [vmem:[%s431] sm:$0x3]
      %v433 = vunpack.c.0.f8e4m3b11 %v432
      %v434 = vunpack.c.1.f8e4m3b11 %v432
      %v435 = vunpack.c.2.f8e4m3b11 %v432
      %v436 = vunpack.c.3.f8e4m3b11 %v432
      %v437 = vand.u32 2147483647, %v433
      %vm438 = vcmp.gt.f32.partialorder %v437, 29.0
      %vm439 = vcmp.ne.f32.partialorder %v433, %v433
      %v440 = vmul.f32 %v433, 16.0
      %v441 = vsel %vm439, -0.0, %v440
      %v442 = vsel %vm438, nan, %v441
      %v443 = vand.u32 2147483647, %v434
      %vm444 = vcmp.gt.f32.partialorder %v443, 29.0
      %vm445 = vcmp.ne.f32.partialorder %v434, %v434
      %v446 = vmul.f32 %v434, 16.0
      %v447 = vsel %vm445, -0.0, %v446
      %v448 = vsel %vm444, nan, %v447
      %v449 = vand.u32 2147483647, %v435
      %vm450 = vcmp.gt.f32.partialorder %v449, 29.0
      %vm451 = vcmp.ne.f32.partialorder %v435, %v435
      %v452 = vmul.f32 %v435, 16.0
      %v453 = vsel %vm451, -0.0, %v452
      %v454 = vsel %vm450, nan, %v453
      %v455 = vand.u32 2147483647, %v436
      %vm456 = vcmp.gt.f32.partialorder %v455, 29.0
      %vm457 = vcmp.ne.f32.partialorder %v436, %v436
      %v458 = vmul.f32 %v436, 16.0
      %v459 = vsel %vm457, -0.0, %v458
      %v460 = vsel %vm456, nan, %v459
    $region40: #{tpu_custom_call.1} parent=1
      #allocation19 [shape = 'u8[4096]{0}', space=vmem, size = 0x1000, scoped, tag = 'scoped memory for tpu_custom_call.1']
      %461 = vst [vmem:[#allocation19] sm:$0xff] %v209
      %v462 = vld [vmem:[#allocation19] sm:$0x3]
      %v463 = vunpack.c.0.f8e4m3b11 %v462
      %v464 = vunpack.c.1.f8e4m3b11 %v462
      %v465 = vunpack.c.2.f8e4m3b11 %v462
      %v466 = vunpack.c.3.f8e4m3b11 %v462
      %v467 = vand.u32 2147483647, %v463
      %vm468 = vcmp.gt.f32.partialorder %v467, 29.0
      %vm469 = vcmp.ne.f32.partialorder %v463, %v463
      %v470 = vmul.f32 %v463, 16.0
      %v471 = vsel %vm469, -0.0, %v470
      %v472 = vsel %vm468, nan, %v471
      %v473 = vand.u32 2147483647, %v464
      %vm474 = vcmp.gt.f32.partialorder %v473, 29.0
      %vm475 = vcmp.ne.f32.partialorder %v464, %v464
      %v476 = vmul.f32 %v464, 16.0
      %v477 = vsel %vm475, -0.0, %v476
      %v478 = vsel %vm474, nan, %v477
      %v479 = vand.u32 2147483647, %v465
      %vm480 = vcmp.gt.f32.partialorder %v479, 29.0
      %vm481 = vcmp.ne.f32.partialorder %v465, %v465
      %v482 = vmul.f32 %v465, 16.0
      %v483 = vsel %vm481, -0.0, %v482
      %v484 = vsel %vm480, nan, %v483
      %v485 = vand.u32 2147483647, %v466
      %vm486 = vcmp.gt.f32.partialorder %v485, 29.0
      %vm487 = vcmp.ne.f32.partialorder %v466, %v466
      %v488 = vmul.f32 %v466, 16.0
      %v489 = vsel %vm487, -0.0, %v488
      %v490 = vsel %vm486, nan, %v489
    $region41: #{tpu_custom_call.1} parent=1
      #allocation20 [shape = 'u8[4096]{0}', space=vmem, size = 0x1000, scoped, tag = 'scoped memory for tpu_custom_call.1']
      %491 = vst [vmem:[#allocation20] sm:$0xff] %v210
      %v492 = vld [vmem:[#allocation20] sm:$0x3]
      %v493 = vunpack.c.0.f8e4m3b11 %v492
      %v494 = vunpack.c.1.f8e4m3b11 %v492
      %v495 = vunpack.c.2.f8e4m3b11 %v492
      %v496 = vunpack.c.3.f8e4m3b11 %v492
      %v497 = vand.u32 2147483647, %v493
      %vm498 = vcmp.gt.f32.partialorder %v497, 29.0
      %vm499 = vcmp.ne.f32.partialorder %v493, %v493
      %v500 = vmul.f32 %v493, 16.0
      %v501 = vsel %vm499, -0.0, %v500
      %v502 = vsel %vm498, nan, %v501
      %v503 = vand.u32 2147483647, %v494
      %vm504 = vcmp.gt.f32.partialorder %v503, 29.0
      %vm505 = vcmp.ne.f32.partialorder %v494, %v494
      %v506 = vmul.f32 %v494, 16.0
      %v507 = vsel %vm505, -0.0, %v506
      %v508 = vsel %vm504, nan, %v507
      %v509 = vand.u32 2147483647, %v495
      %vm510 = vcmp.gt.f32.partialorder %v509, 29.0
      %vm511 = vcmp.ne.f32.partialorder %v495, %v495
      %v512 = vmul.f32 %v495, 16.0
      %v513 = vsel %vm511, -0.0, %v512
      %v514 = vsel %vm510, nan, %v513
      %v515 = vand.u32 2147483647, %v496
      %vm516 = vcmp.gt.f32.partialorder %v515, 29.0
      %vm517 = vcmp.ne.f32.partialorder %v496, %v496
      %v518 = vmul.f32 %v496, 16.0
      %v519 = vsel %vm517, -0.0, %v518
      %v520 = vsel %vm516, nan, %v519
    $region42: #{tpu_custom_call.1} parent=1
      #allocation21 [shape = 'u8[4096]{0}', space=vmem, size = 0x1000, scoped, tag = 'scoped memory for tpu_custom_call.1']
      %521 = vst [vmem:[#allocation21] sm:$0xff] %v209
      %s522 = scalar_lea.vmem [#allocation21], 2
      %v523 = vld [vmem:[%s522] sm:$0x3]
      %v524 = vunpack.c.0.f8e4m3b11 %v523
      %v525 = vunpack.c.1.f8e4m3b11 %v523
      %v526 = vunpack.c.2.f8e4m3b11 %v523
      %v527 = vunpack.c.3.f8e4m3b11 %v523
      %v528 = vand.u32 2147483647, %v524
      %vm529 = vcmp.gt.f32.partialorder %v528, 29.0
      %vm530 = vcmp.ne.f32.partialorder %v524, %v524
      %v531 = vmul.f32 %v524, 16.0
      %v532 = vsel %vm530, -0.0, %v531
      %v533 = vsel %vm529, nan, %v532
      %v534 = vand.u32 2147483647, %v525
      %vm535 = vcmp.gt.f32.partialorder %v534, 29.0
      %vm536 = vcmp.ne.f32.partialorder %v525, %v525
      %v537 = vmul.f32 %v525, 16.0
      %v538 = vsel %vm536, -0.0, %v537
      %v539 = vsel %vm535, nan, %v538
      %v540 = vand.u32 2147483647, %v526
      %vm541 = vcmp.gt.f32.partialorder %v540, 29.0
      %vm542 = vcmp.ne.f32.partialorder %v526, %v526
      %v543 = vmul.f32 %v526, 16.0
      %v544 = vsel %vm542, -0.0, %v543
      %v545 = vsel %vm541, nan, %v544
      %v546 = vand.u32 2147483647, %v527
      %vm547 = vcmp.gt.f32.partialorder %v546, 29.0
      %vm548 = vcmp.ne.f32.partialorder %v527, %v527
      %v549 = vmul.f32 %v527, 16.0
      %v550 = vsel %vm548, -0.0, %v549
      %v551 = vsel %vm547, nan, %v550
    $region43: #{tpu_custom_call.1} parent=1
      #allocation22 [shape = 'u8[4096]{0}', space=vmem, size = 0x1000, scoped, tag = 'scoped memory for tpu_custom_call.1']
      %552 = vst [vmem:[#allocation22] sm:$0xff] %v210
      %s553 = scalar_lea.vmem [#allocation22], 2
      %v554 = vld [vmem:[%s553] sm:$0x3]
      %v555 = vunpack.c.0.f8e4m3b11 %v554
      %v556 = vunpack.c.1.f8e4m3b11 %v554
      %v557 = vunpack.c.2.f8e4m3b11 %v554
      %v558 = vunpack.c.3.f8e4m3b11 %v554
      %v559 = vand.u32 2147483647, %v555
      %vm560 = vcmp.gt.f32.partialorder %v559, 29.0
      %vm561 = vcmp.ne.f32.partialorder %v555, %v555
      %v562 = vmul.f32 %v555, 16.0
      %v563 = vsel %vm561, -0.0, %v562
      %v564 = vsel %vm560, nan, %v563
      %v565 = vand.u32 2147483647, %v556
      %vm566 = vcmp.gt.f32.partialorder %v565, 29.0
      %vm567 = vcmp.ne.f32.partialorder %v556, %v556
      %v568 = vmul.f32 %v556, 16.0
      %v569 = vsel %vm567, -0.0, %v568
      %v570 = vsel %vm566, nan, %v569
      %v571 = vand.u32 2147483647, %v557
      %vm572 = vcmp.gt.f32.partialorder %v571, 29.0
      %vm573 = vcmp.ne.f32.partialorder %v557, %v557
      %v574 = vmul.f32 %v557, 16.0
      %v575 = vsel %vm573, -0.0, %v574
      %v576 = vsel %vm572, nan, %v575
      %v577 = vand.u32 2147483647, %v558
      %vm578 = vcmp.gt.f32.partialorder %v577, 29.0
      %vm579 = vcmp.ne.f32.partialorder %v558, %v558
      %v580 = vmul.f32 %v558, 16.0
      %v581 = vsel %vm579, -0.0, %v580
      %v582 = vsel %vm578, nan, %v581
    $region44: #{tpu_custom_call.1} parent=1
      #allocation23 [shape = 'u8[4096]{0}', space=vmem, size = 0x1000, scoped, tag = 'scoped memory for tpu_custom_call.1']
      %583 = vst [vmem:[#allocation23] sm:$0xff] %v209
      %s584 = scalar_lea.vmem [#allocation23], 4
      %v585 = vld [vmem:[%s584] sm:$0x3]
      %v586 = vunpack.c.0.f8e4m3b11 %v585
      %v587 = vunpack.c.1.f8e4m3b11 %v585
      %v588 = vunpack.c.2.f8e4m3b11 %v585
      %v589 = vunpack.c.3.f8e4m3b11 %v585
      %v590 = vand.u32 2147483647, %v586
      %vm591 = vcmp.gt.f32.partialorder %v590, 29.0
      %vm592 = vcmp.ne.f32.partialorder %v586, %v586
      %v593 = vmul.f32 %v586, 16.0
      %v594 = vsel %vm592, -0.0, %v593
      %v595 = vsel %vm591, nan, %v594
      %v596 = vand.u32 2147483647, %v587
      %vm597 = vcmp.gt.f32.partialorder %v596, 29.0
      %vm598 = vcmp.ne.f32.partialorder %v587, %v587
      %v599 = vmul.f32 %v587, 16.0
      %v600 = vsel %vm598, -0.0, %v599
      %v601 = vsel %vm597, nan, %v600
      %v602 = vand.u32 2147483647, %v588
      %vm603 = vcmp.gt.f32.partialorder %v602, 29.0
      %vm604 = vcmp.ne.f32.partialorder %v588, %v588
      %v605 = vmul.f32 %v588, 16.0
      %v606 = vsel %vm604, -0.0, %v605
      %v607 = vsel %vm603, nan, %v606
      %v608 = vand.u32 2147483647, %v589
      %vm609 = vcmp.gt.f32.partialorder %v608, 29.0
      %vm610 = vcmp.ne.f32.partialorder %v589, %v589
      %v611 = vmul.f32 %v589, 16.0
      %v612 = vsel %vm610, -0.0, %v611
      %v613 = vsel %vm609, nan, %v612
    $region45: #{tpu_custom_call.1} parent=1
      #allocation24 [shape = 'u8[4096]{0}', space=vmem, size = 0x1000, scoped, tag = 'scoped memory for tpu_custom_call.1']
      %614 = vst [vmem:[#allocation24] sm:$0xff] %v210
      %s615 = scalar_lea.vmem [#allocation24], 4
      %v616 = vld [vmem:[%s615] sm:$0x3]
      %v617 = vunpack.c.0.f8e4m3b11 %v616
      %v618 = vunpack.c.1.f8e4m3b11 %v616
      %v619 = vunpack.c.2.f8e4m3b11 %v616
      %v620 = vunpack.c.3.f8e4m3b11 %v616
      %v621 = vand.u32 2147483647, %v617
      %vm622 = vcmp.gt.f32.partialorder %v621, 29.0
      %vm623 = vcmp.ne.f32.partialorder %v617, %v617
      %v624 = vmul.f32 %v617, 16.0
      %v625 = vsel %vm623, -0.0, %v624
      %v626 = vsel %vm622, nan, %v625
      %v627 = vand.u32 2147483647, %v618
      %vm628 = vcmp.gt.f32.partialorder %v627, 29.0
      %vm629 = vcmp.ne.f32.partialorder %v618, %v618
      %v630 = vmul.f32 %v618, 16.0
      %v631 = vsel %vm629, -0.0, %v630
      %v632 = vsel %vm628, nan, %v631
      %v633 = vand.u32 2147483647, %v619
      %vm634 = vcmp.gt.f32.partialorder %v633, 29.0
      %vm635 = vcmp.ne.f32.partialorder %v619, %v619
      %v636 = vmul.f32 %v619, 16.0
      %v637 = vsel %vm635, -0.0, %v636
      %v638 = vsel %vm634, nan, %v637
      %v639 = vand.u32 2147483647, %v620
      %vm640 = vcmp.gt.f32.partialorder %v639, 29.0
      %vm641 = vcmp.ne.f32.partialorder %v620, %v620
      %v642 = vmul.f32 %v620, 16.0
      %v643 = vsel %vm641, -0.0, %v642
      %v644 = vsel %vm640, nan, %v643
    $region46: #{tpu_custom_call.1} parent=1
      #allocation25 [shape = 'u8[4096]{0}', space=vmem, size = 0x1000, scoped, tag = 'scoped memory for tpu_custom_call.1']
      %645 = vst [vmem:[#allocation25] sm:$0xff] %v209
      %s646 = scalar_lea.vmem [#allocation25], 6
      %v647 = vld [vmem:[%s646] sm:$0x3]
      %v648 = vunpack.c.0.f8e4m3b11 %v647
      %v649 = vunpack.c.1.f8e4m3b11 %v647
      %v650 = vunpack.c.2.f8e4m3b11 %v647
      %v651 = vunpack.c.3.f8e4m3b11 %v647
      %v652 = vand.u32 2147483647, %v648
      %vm653 = vcmp.gt.f32.partialorder %v652, 29.0
      %vm654 = vcmp.ne.f32.partialorder %v648, %v648
      %v655 = vmul.f32 %v648, 16.0
      %v656 = vsel %vm654, -0.0, %v655
      %v657 = vsel %vm653, nan, %v656
      %v658 = vand.u32 2147483647, %v649
      %vm659 = vcmp.gt.f32.partialorder %v658, 29.0
      %vm660 = vcmp.ne.f32.partialorder %v649, %v649
      %v661 = vmul.f32 %v649, 16.0
      %v662 = vsel %vm660, -0.0, %v661
      %v663 = vsel %vm659, nan, %v662
      %v664 = vand.u32 2147483647, %v650
      %vm665 = vcmp.gt.f32.partialorder %v664, 29.0
      %vm666 = vcmp.ne.f32.partialorder %v650, %v650
      %v667 = vmul.f32 %v650, 16.0
      %v668 = vsel %vm666, -0.0, %v667
      %v669 = vsel %vm665, nan, %v668
      %v670 = vand.u32 2147483647, %v651
      %vm671 = vcmp.gt.f32.partialorder %v670, 29.0
      %vm672 = vcmp.ne.f32.partialorder %v651, %v651
      %v673 = vmul.f32 %v651, 16.0
      %v674 = vsel %vm672, -0.0, %v673
      %v675 = vsel %vm671, nan, %v674
    $region47: #{tpu_custom_call.1} parent=1
      #allocation26 [shape = 'u8[4096]{0}', space=vmem, size = 0x1000, scoped, tag = 'scoped memory for tpu_custom_call.1']
      %676 = vst [vmem:[#allocation26] sm:$0xff] %v210
      %s677 = scalar_lea.vmem [#allocation26], 6
      %v678 = vld [vmem:[%s677] sm:$0x3]
      %v679 = vunpack.c.0.f8e4m3b11 %v678
      %v680 = vunpack.c.1.f8e4m3b11 %v678
      %v681 = vunpack.c.2.f8e4m3b11 %v678
      %v682 = vunpack.c.3.f8e4m3b11 %v678
      %v683 = vand.u32 2147483647, %v679
      %vm684 = vcmp.gt.f32.partialorder %v683, 29.0
      %vm685 = vcmp.ne.f32.partialorder %v679, %v679
      %v686 = vmul.f32 %v679, 16.0
      %v687 = vsel %vm685, -0.0, %v686
      %v688 = vsel %vm684, nan, %v687
      %v689 = vand.u32 2147483647, %v680
      %vm690 = vcmp.gt.f32.partialorder %v689, 29.0
      %vm691 = vcmp.ne.f32.partialorder %v680, %v680
      %v692 = vmul.f32 %v680, 16.0
      %v693 = vsel %vm691, -0.0, %v692
      %v694 = vsel %vm690, nan, %v693
      %v695 = vand.u32 2147483647, %v681
      %vm696 = vcmp.gt.f32.partialorder %v695, 29.0
      %vm697 = vcmp.ne.f32.partialorder %v681, %v681
      %v698 = vmul.f32 %v681, 16.0
      %v699 = vsel %vm697, -0.0, %v698
      %v700 = vsel %vm696, nan, %v699
      %v701 = vand.u32 2147483647, %v682
      %vm702 = vcmp.gt.f32.partialorder %v701, 29.0
      %vm703 = vcmp.ne.f32.partialorder %v682, %v682
      %v704 = vmul.f32 %v682, 16.0
      %v705 = vsel %vm703, -0.0, %v704
      %v706 = vsel %vm702, nan, %v705
    $region48: #{tpu_custom_call.1} parent=1
      #allocation27 [shape = 'u8[4096]{0}', space=vmem, size = 0x1000, scoped, tag = 'scoped memory for tpu_custom_call.1']
      %707 = vst [vmem:[#allocation27] sm:$0xff] %v211
      %v708 = vld [vmem:[#allocation27] sm:$0x3]
      %v709 = vunpack.c.0.f8e4m3b11 %v708
      %v710 = vunpack.c.1.f8e4m3b11 %v708
      %v711 = vunpack.c.2.f8e4m3b11 %v708
      %v712 = vunpack.c.3.f8e4m3b11 %v708
      %v713 = vand.u32 2147483647, %v709
      %vm714 = vcmp.gt.f32.partialorder %v713, 29.0
      %vm715 = vcmp.ne.f32.partialorder %v709, %v709
      %v716 = vmul.f32 %v709, 16.0
      %v717 = vsel %vm715, -0.0, %v716
      %v718 = vsel %vm714, nan, %v717
      %v719 = vand.u32 2147483647, %v710
      %vm720 = vcmp.gt.f32.partialorder %v719, 29.0
      %vm721 = vcmp.ne.f32.partialorder %v710, %v710
      %v722 = vmul.f32 %v710, 16.0
      %v723 = vsel %vm721, -0.0, %v722
      %v724 = vsel %vm720, nan, %v723
      %v725 = vand.u32 2147483647, %v711
      %vm726 = vcmp.gt.f32.partialorder %v725, 29.0
      %vm727 = vcmp.ne.f32.partialorder %v711, %v711
      %v728 = vmul.f32 %v711, 16.0
      %v729 = vsel %vm727, -0.0, %v728
      %v730 = vsel %vm726, nan, %v729
      %v731 = vand.u32 2147483647, %v712
      %vm732 = vcmp.gt.f32.partialorder %v731, 29.0
      %vm733 = vcmp.ne.f32.partialorder %v712, %v712
      %v734 = vmul.f32 %v712, 16.0
      %v735 = vsel %vm733, -0.0, %v734
      %v736 = vsel %vm732, nan, %v735
    $region49: #{tpu_custom_call.1} parent=1
      #allocation28 [shape = 'u8[4096]{0}', space=vmem, size = 0x1000, scoped, tag = 'scoped memory for tpu_custom_call.1']
      %737 = vst [vmem:[#allocation28] sm:$0xff] %v212
      %v738 = vld [vmem:[#allocation28] sm:$0x3]
      %v739 = vunpack.c.0.f8e4m3b11 %v738
      %v740 = vunpack.c.1.f8e4m3b11 %v738
      %v741 = vunpack.c.2.f8e4m3b11 %v738
      %v742 = vunpack.c.3.f8e4m3b11 %v738
      %v743 = vand.u32 2147483647, %v739
      %vm744 = vcmp.gt.f32.partialorder %v743, 29.0
      %vm745 = vcmp.ne.f32.partialorder %v739, %v739
      %v746 = vmul.f32 %v739, 16.0
      %v747 = vsel %vm745, -0.0, %v746
      %v748 = vsel %vm744, nan, %v747
      %v749 = vand.u32 2147483647, %v740
      %vm750 = vcmp.gt.f32.partialorder %v749, 29.0
      %vm751 = vcmp.ne.f32.partialorder %v740, %v740
      %v752 = vmul.f32 %v740, 16.0
      %v753 = vsel %vm751, -0.0, %v752
      %v754 = vsel %vm750, nan, %v753
      %v755 = vand.u32 2147483647, %v741
      %vm756 = vcmp.gt.f32.partialorder %v755, 29.0
      %vm757 = vcmp.ne.f32.partialorder %v741, %v741
      %v758 = vmul.f32 %v741, 16.0
      %v759 = vsel %vm757, -0.0, %v758
      %v760 = vsel %vm756, nan, %v759
      %v761 = vand.u32 2147483647, %v742
      %vm762 = vcmp.gt.f32.partialorder %v761, 29.0
      %vm763 = vcmp.ne.f32.partialorder %v742, %v742
      %v764 = vmul.f32 %v742, 16.0
      %v765 = vsel %vm763, -0.0, %v764
      %v766 = vsel %vm762, nan, %v765
    $region50: #{tpu_custom_call.1} parent=1
      #allocation29 [shape = 'u8[4096]{0}', space=vmem, size = 0x1000, scoped, tag = 'scoped memory for tpu_custom_call.1']
      %767 = vst [vmem:[#allocation29] sm:$0xff] %v211
      %s768 = scalar_lea.vmem [#allocation29], 2
      %v769 = vld [vmem:[%s768] sm:$0x3]
      %v770 = vunpack.c.0.f8e4m3b11 %v769
      %v771 = vunpack.c.1.f8e4m3b11 %v769
      %v772 = vunpack.c.2.f8e4m3b11 %v769
      %v773 = vunpack.c.3.f8e4m3b11 %v769
      %v774 = vand.u32 2147483647, %v770
      %vm775 = vcmp.gt.f32.partialorder %v774, 29.0
      %vm776 = vcmp.ne.f32.partialorder %v770, %v770
      %v777 = vmul.f32 %v770, 16.0
      %v778 = vsel %vm776, -0.0, %v777
      %v779 = vsel %vm775, nan, %v778
      %v780 = vand.u32 2147483647, %v771
      %vm781 = vcmp.gt.f32.partialorder %v780, 29.0
      %vm782 = vcmp.ne.f32.partialorder %v771, %v771
      %v783 = vmul.f32 %v771, 16.0
      %v784 = vsel %vm782, -0.0, %v783
      %v785 = vsel %vm781, nan, %v784
      %v786 = vand.u32 2147483647, %v772
      %vm787 = vcmp.gt.f32.partialorder %v786, 29.0
      %vm788 = vcmp.ne.f32.partialorder %v772, %v772
      %v789 = vmul.f32 %v772, 16.0
      %v790 = vsel %vm788, -0.0, %v789
      %v791 = vsel %vm787, nan, %v790
      %v792 = vand.u32 2147483647, %v773
      %vm793 = vcmp.gt.f32.partialorder %v792, 29.0
      %vm794 = vcmp.ne.f32.partialorder %v773, %v773
      %v795 = vmul.f32 %v773, 16.0
      %v796 = vsel %vm794, -0.0, %v795
      %v797 = vsel %vm793, nan, %v796
    $region51: #{tpu_custom_call.1} parent=1
      #allocation30 [shape = 'u8[4096]{0}', space=vmem, size = 0x1000, scoped, tag = 'scoped memory for tpu_custom_call.1']
      %798 = vst [vmem:[#allocation30] sm:$0xff] %v212
      %s799 = scalar_lea.vmem [#allocation30], 2
      %v800 = vld [vmem:[%s799] sm:$0x3]
      %v801 = vunpack.c.0.f8e4m3b11 %v800
      %v802 = vunpack.c.1.f8e4m3b11 %v800
      %v803 = vunpack.c.2.f8e4m3b11 %v800
      %v804 = vunpack.c.3.f8e4m3b11 %v800
      %v805 = vand.u32 2147483647, %v801
      %vm806 = vcmp.gt.f32.partialorder %v805, 29.0
      %vm807 = vcmp.ne.f32.partialorder %v801, %v801
      %v808 = vmul.f32 %v801, 16.0
      %v809 = vsel %vm807, -0.0, %v808
      %v810 = vsel %vm806, nan, %v809
      %v811 = vand.u32 2147483647, %v802
      %vm812 = vcmp.gt.f32.partialorder %v811, 29.0
      %vm813 = vcmp.ne.f32.partialorder %v802, %v802
      %v814 = vmul.f32 %v802, 16.0
      %v815 = vsel %vm813, -0.0, %v814
      %v816 = vsel %vm812, nan, %v815
      %v817 = vand.u32 2147483647, %v803
      %vm818 = vcmp.gt.f32.partialorder %v817, 29.0
      %vm819 = vcmp.ne.f32.partialorder %v803, %v803
      %v820 = vmul.f32 %v803, 16.0
      %v821 = vsel %vm819, -0.0, %v820
      %v822 = vsel %vm818, nan, %v821
      %v823 = vand.u32 2147483647, %v804
      %vm824 = vcmp.gt.f32.partialorder %v823, 29.0
      %vm825 = vcmp.ne.f32.partialorder %v804, %v804
      %v826 = vmul.f32 %v804, 16.0
      %v827 = vsel %vm825, -0.0, %v826
      %v828 = vsel %vm824, nan, %v827
    $region52: #{tpu_custom_call.1} parent=1
      #allocation31 [shape = 'u8[4096]{0}', space=vmem, size = 0x1000, scoped, tag = 'scoped memory for tpu_custom_call.1']
      %829 = vst [vmem:[#allocation31] sm:$0xff] %v211
      %s830 = scalar_lea.vmem [#allocation31], 4
      %v831 = vld [vmem:[%s830] sm:$0x3]
      %v832 = vunpack.c.0.f8e4m3b11 %v831
      %v833 = vunpack.c.1.f8e4m3b11 %v831
      %v834 = vunpack.c.2.f8e4m3b11 %v831
      %v835 = vunpack.c.3.f8e4m3b11 %v831
      %v836 = vand.u32 2147483647, %v832
      %vm837 = vcmp.gt.f32.partialorder %v836, 29.0
      %vm838 = vcmp.ne.f32.partialorder %v832, %v832
      %v839 = vmul.f32 %v832, 16.0
      %v840 = vsel %vm838, -0.0, %v839
      %v841 = vsel %vm837, nan, %v840
      %v842 = vand.u32 2147483647, %v833
      %vm843 = vcmp.gt.f32.partialorder %v842, 29.0
      %vm844 = vcmp.ne.f32.partialorder %v833, %v833
      %v845 = vmul.f32 %v833, 16.0
      %v846 = vsel %vm844, -0.0, %v845
      %v847 = vsel %vm843, nan, %v846
      %v848 = vand.u32 2147483647, %v834
      %vm849 = vcmp.gt.f32.partialorder %v848, 29.0
      %vm850 = vcmp.ne.f32.partialorder %v834, %v834
      %v851 = vmul.f32 %v834, 16.0
      %v852 = vsel %vm850, -0.0, %v851
      %v853 = vsel %vm849, nan, %v852
      %v854 = vand.u32 2147483647, %v835
      %vm855 = vcmp.gt.f32.partialorder %v854, 29.0
      %vm856 = vcmp.ne.f32.partialorder %v835, %v835
      %v857 = vmul.f32 %v835, 16.0
      %v858 = vsel %vm856, -0.0, %v857
      %v859 = vsel %vm855, nan, %v858
    $region53: #{tpu_custom_call.1} parent=1
      #allocation32 [shape = 'u8[4096]{0}', space=vmem, size = 0x1000, scoped, tag = 'scoped memory for tpu_custom_call.1']
      %860 = vst [vmem:[#allocation32] sm:$0xff] %v212
      %s861 = scalar_lea.vmem [#allocation32], 4
      %v862 = vld [vmem:[%s861] sm:$0x3]
      %v863 = vunpack.c.0.f8e4m3b11 %v862
      %v864 = vunpack.c.1.f8e4m3b11 %v862
      %v865 = vunpack.c.2.f8e4m3b11 %v862
      %v866 = vunpack.c.3.f8e4m3b11 %v862
      %v867 = vand.u32 2147483647, %v863
      %vm868 = vcmp.gt.f32.partialorder %v867, 29.0
      %vm869 = vcmp.ne.f32.partialorder %v863, %v863
      %v870 = vmul.f32 %v863, 16.0
      %v871 = vsel %vm869, -0.0, %v870
      %v872 = vsel %vm868, nan, %v871
      %v873 = vand.u32 2147483647, %v864
      %vm874 = vcmp.gt.f32.partialorder %v873, 29.0
      %vm875 = vcmp.ne.f32.partialorder %v864, %v864
      %v876 = vmul.f32 %v864, 16.0
      %v877 = vsel %vm875, -0.0, %v876
      %v878 = vsel %vm874, nan, %v877
      %v879 = vand.u32 2147483647, %v865
      %vm880 = vcmp.gt.f32.partialorder %v879, 29.0
      %vm881 = vcmp.ne.f32.partialorder %v865, %v865
      %v882 = vmul.f32 %v865, 16.0
      %v883 = vsel %vm881, -0.0, %v882
      %v884 = vsel %vm880, nan, %v883
      %v885 = vand.u32 2147483647, %v866
      %vm886 = vcmp.gt.f32.partialorder %v885, 29.0
      %vm887 = vcmp.ne.f32.partialorder %v866, %v866
      %v888 = vmul.f32 %v866, 16.0
      %v889 = vsel %vm887, -0.0, %v888
      %v890 = vsel %vm886, nan, %v889
    $region54: #{tpu_custom_call.1} parent=1
      #allocation33 [shape = 'u8[4096]{0}', space=vmem, size = 0x1000, scoped, tag = 'scoped memory for tpu_custom_call.1']
      %891 = vst [vmem:[#allocation33] sm:$0xff] %v211
      %s892 = scalar_lea.vmem [#allocation33], 6
      %v893 = vld [vmem:[%s892] sm:$0x3]
      %v894 = vunpack.c.0.f8e4m3b11 %v893
      %v895 = vunpack.c.1.f8e4m3b11 %v893
      %v896 = vunpack.c.2.f8e4m3b11 %v893
      %v897 = vunpack.c.3.f8e4m3b11 %v893
      %v898 = vand.u32 2147483647, %v894
      %vm899 = vcmp.gt.f32.partialorder %v898, 29.0
      %vm900 = vcmp.ne.f32.partialorder %v894, %v894
      %v901 = vmul.f32 %v894, 16.0
      %v902 = vsel %vm900, -0.0, %v901
      %v903 = vsel %vm899, nan, %v902
      %v904 = vand.u32 2147483647, %v895
      %vm905 = vcmp.gt.f32.partialorder %v904, 29.0
      %vm906 = vcmp.ne.f32.partialorder %v895, %v895
      %v907 = vmul.f32 %v895, 16.0
      %v908 = vsel %vm906, -0.0, %v907
      %v909 = vsel %vm905, nan, %v908
      %v910 = vand.u32 2147483647, %v896
      %vm911 = vcmp.gt.f32.partialorder %v910, 29.0
      %vm912 = vcmp.ne.f32.partialorder %v896, %v896
      %v913 = vmul.f32 %v896, 16.0
      %v914 = vsel %vm912, -0.0, %v913
      %v915 = vsel %vm911, nan, %v914
      %v916 = vand.u32 2147483647, %v897
      %vm917 = vcmp.gt.f32.partialorder %v916, 29.0
      %vm918 = vcmp.ne.f32.partialorder %v897, %v897
      %v919 = vmul.f32 %v897, 16.0
      %v920 = vsel %vm918, -0.0, %v919
      %v921 = vsel %vm917, nan, %v920
    $region55: #{tpu_custom_call.1} parent=1
      #allocation34 [shape = 'u8[4096]{0}', space=vmem, size = 0x1000, scoped, tag = 'scoped memory for tpu_custom_call.1']
      %922 = vst [vmem:[#allocation34] sm:$0xff] %v212
      %s923 = scalar_lea.vmem [#allocation34], 6
      %v924 = vld [vmem:[%s923] sm:$0x3]
      %v925 = vunpack.c.0.f8e4m3b11 %v924
      %v926 = vunpack.c.1.f8e4m3b11 %v924
      %v927 = vunpack.c.2.f8e4m3b11 %v924
      %v928 = vunpack.c.3.f8e4m3b11 %v924
      %v929 = vand.u32 2147483647, %v925
      %vm930 = vcmp.gt.f32.partialorder %v929, 29.0
      %vm931 = vcmp.ne.f32.partialorder %v925, %v925
      %v932 = vmul.f32 %v925, 16.0
      %v933 = vsel %vm931, -0.0, %v932
      %v934 = vsel %vm930, nan, %v933
      %v935 = vand.u32 2147483647, %v926
      %vm936 = vcmp.gt.f32.partialorder %v935, 29.0
      %vm937 = vcmp.ne.f32.partialorder %v926, %v926
      %v938 = vmul.f32 %v926, 16.0
      %v939 = vsel %vm937, -0.0, %v938
      %v940 = vsel %vm936, nan, %v939
      %v941 = vand.u32 2147483647, %v927
      %vm942 = vcmp.gt.f32.partialorder %v941, 29.0
      %vm943 = vcmp.ne.f32.partialorder %v927, %v927
      %v944 = vmul.f32 %v927, 16.0
      %v945 = vsel %vm943, -0.0, %v944
      %v946 = vsel %vm942, nan, %v945
      %v947 = vand.u32 2147483647, %v928
      %vm948 = vcmp.gt.f32.partialorder %v947, 29.0
      %vm949 = vcmp.ne.f32.partialorder %v928, %v928
      %v950 = vmul.f32 %v928, 16.0
      %v951 = vsel %vm949, -0.0, %v950
      %v952 = vsel %vm948, nan, %v951
    $region56: #{tpu_custom_call.1} parent=1
      #allocation35 [shape = 'u8[4096]{0}', space=vmem, size = 0x1000, scoped, tag = 'scoped memory for tpu_custom_call.1']
      %953 = vst [vmem:[#allocation35] sm:$0xff] %v213
      %v954 = vld [vmem:[#allocation35] sm:$0x3]
      %v955 = vunpack.c.0.f8e4m3b11 %v954
      %v956 = vunpack.c.1.f8e4m3b11 %v954
      %v957 = vunpack.c.2.f8e4m3b11 %v954
      %v958 = vunpack.c.3.f8e4m3b11 %v954
      %v959 = vand.u32 2147483647, %v955
      %vm960 = vcmp.gt.f32.partialorder %v959, 29.0
      %vm961 = vcmp.ne.f32.partialorder %v955, %v955
      %v962 = vmul.f32 %v955, 16.0
      %v963 = vsel %vm961, -0.0, %v962
      %v964 = vsel %vm960, nan, %v963
      %v965 = vand.u32 2147483647, %v956
      %vm966 = vcmp.gt.f32.partialorder %v965, 29.0
      %vm967 = vcmp.ne.f32.partialorder %v956, %v956
      %v968 = vmul.f32 %v956, 16.0
      %v969 = vsel %vm967, -0.0, %v968
      %v970 = vsel %vm966, nan, %v969
      %v971 = vand.u32 2147483647, %v957
      %vm972 = vcmp.gt.f32.partialorder %v971, 29.0
      %vm973 = vcmp.ne.f32.partialorder %v957, %v957
      %v974 = vmul.f32 %v957, 16.0
      %v975 = vsel %vm973, -0.0, %v974
      %v976 = vsel %vm972, nan, %v975
      %v977 = vand.u32 2147483647, %v958
      %vm978 = vcmp.gt.f32.partialorder %v977, 29.0
      %vm979 = vcmp.ne.f32.partialorder %v958, %v958
      %v980 = vmul.f32 %v958, 16.0
      %v981 = vsel %vm979, -0.0, %v980
      %v982 = vsel %vm978, nan, %v981
    $region57: #{tpu_custom_call.1} parent=1
      #allocation36 [shape = 'u8[4096]{0}', space=vmem, size = 0x1000, scoped, tag = 'scoped memory for tpu_custom_call.1']
      %983 = vst [vmem:[#allocation36] sm:$0xff] %v214
      %v984 = vld [vmem:[#allocation36] sm:$0x3]
      %v985 = vunpack.c.0.f8e4m3b11 %v984
      %v986 = vunpack.c.1.f8e4m3b11 %v984
      %v987 = vunpack.c.2.f8e4m3b11 %v984
      %v988 = vunpack.c.3.f8e4m3b11 %v984
      %v989 = vand.u32 2147483647, %v985
      %vm990 = vcmp.gt.f32.partialorder %v989, 29.0
      %vm991 = vcmp.ne.f32.partialorder %v985, %v985
      %v992 = vmul.f32 %v985, 16.0
      %v993 = vsel %vm991, -0.0, %v992
      %v994 = vsel %vm990, nan, %v993
      %v995 = vand.u32 2147483647, %v986
      %vm996 = vcmp.gt.f32.partialorder %v995, 29.0
      %vm997 = vcmp.ne.f32.partialorder %v986, %v986
      %v998 = vmul.f32 %v986, 16.0
      %v999 = vsel %vm997, -0.0, %v998
      %v1000 = vsel %vm996, nan, %v999
      %v1001 = vand.u32 2147483647, %v987
      %vm1002 = vcmp.gt.f32.partialorder %v1001, 29.0
      %vm1003 = vcmp.ne.f32.partialorder %v987, %v987
      %v1004 = vmul.f32 %v987, 16.0
      %v1005 = vsel %vm1003, -0.0, %v1004
      %v1006 = vsel %vm1002, nan, %v1005
      %v1007 = vand.u32 2147483647, %v988
      %vm1008 = vcmp.gt.f32.partialorder %v1007, 29.0
      %vm1009 = vcmp.ne.f32.partialorder %v988, %v988
      %v1010 = vmul.f32 %v988, 16.0
      %v1011 = vsel %vm1009, -0.0, %v1010
      %v1012 = vsel %vm1008, nan, %v1011
    $region58: #{tpu_custom_call.1} parent=1
      #allocation37 [shape = 'u8[4096]{0}', space=vmem, size = 0x1000, scoped, tag = 'scoped memory for tpu_custom_call.1']
      %1013 = vst [vmem:[#allocation37] sm:$0xff] %v213
      %s1014 = scalar_lea.vmem [#allocation37], 2
      %v1015 = vld [vmem:[%s1014] sm:$0x3]
      %v1016 = vunpack.c.0.f8e4m3b11 %v1015
      %v1017 = vunpack.c.1.f8e4m3b11 %v1015
      %v1018 = vunpack.c.2.f8e4m3b11 %v1015
      %v1019 = vunpack.c.3.f8e4m3b11 %v1015
      %v1020 = vand.u32 2147483647, %v1016
      %vm1021 = vcmp.gt.f32.partialorder %v1020, 29.0
      %vm1022 = vcmp.ne.f32.partialorder %v1016, %v1016
      %v1023 = vmul.f32 %v1016, 16.0
      %v1024 = vsel %vm1022, -0.0, %v1023
      %v1025 = vsel %vm1021, nan, %v1024
      %v1026 = vand.u32 2147483647, %v1017
      %vm1027 = vcmp.gt.f32.partialorder %v1026, 29.0
      %vm1028 = vcmp.ne.f32.partialorder %v1017, %v1017
      %v1029 = vmul.f32 %v1017, 16.0
      %v1030 = vsel %vm1028, -0.0, %v1029
      %v1031 = vsel %vm1027, nan, %v1030
      %v1032 = vand.u32 2147483647, %v1018
      %vm1033 = vcmp.gt.f32.partialorder %v1032, 29.0
      %vm1034 = vcmp.ne.f32.partialorder %v1018, %v1018
      %v1035 = vmul.f32 %v1018, 16.0
      %v1036 = vsel %vm1034, -0.0, %v1035
      %v1037 = vsel %vm1033, nan, %v1036
      %v1038 = vand.u32 2147483647, %v1019
      %vm1039 = vcmp.gt.f32.partialorder %v1038, 29.0
      %vm1040 = vcmp.ne.f32.partialorder %v1019, %v1019
      %v1041 = vmul.f32 %v1019, 16.0
      %v1042 = vsel %vm1040, -0.0, %v1041
      %v1043 = vsel %vm1039, nan, %v1042
    $region59: #{tpu_custom_call.1} parent=1
      #allocation38 [shape = 'u8[4096]{0}', space=vmem, size = 0x1000, scoped, tag = 'scoped memory for tpu_custom_call.1']
      %1044 = vst [vmem:[#allocation38] sm:$0xff] %v214
      %s1045 = scalar_lea.vmem [#allocation38], 2
      %v1046 = vld [vmem:[%s1045] sm:$0x3]
      %v1047 = vunpack.c.0.f8e4m3b11 %v1046
      %v1048 = vunpack.c.1.f8e4m3b11 %v1046
      %v1049 = vunpack.c.2.f8e4m3b11 %v1046
      %v1050 = vunpack.c.3.f8e4m3b11 %v1046
      %v1051 = vand.u32 2147483647, %v1047
      %vm1052 = vcmp.gt.f32.partialorder %v1051, 29.0
      %vm1053 = vcmp.ne.f32.partialorder %v1047, %v1047
      %v1054 = vmul.f32 %v1047, 16.0
      %v1055 = vsel %vm1053, -0.0, %v1054
      %v1056 = vsel %vm1052, nan, %v1055
      %v1057 = vand.u32 2147483647, %v1048
      %vm1058 = vcmp.gt.f32.partialorder %v1057, 29.0
      %vm1059 = vcmp.ne.f32.partialorder %v1048, %v1048
      %v1060 = vmul.f32 %v1048, 16.0
      %v1061 = vsel %vm1059, -0.0, %v1060
      %v1062 = vsel %vm1058, nan, %v1061
      %v1063 = vand.u32 2147483647, %v1049
      %vm1064 = vcmp.gt.f32.partialorder %v1063, 29.0
      %vm1065 = vcmp.ne.f32.partialorder %v1049, %v1049
      %v1066 = vmul.f32 %v1049, 16.0
      %v1067 = vsel %vm1065, -0.0, %v1066
      %v1068 = vsel %vm1064, nan, %v1067
      %v1069 = vand.u32 2147483647, %v1050
      %vm1070 = vcmp.gt.f32.partialorder %v1069, 29.0
      %vm1071 = vcmp.ne.f32.partialorder %v1050, %v1050
      %v1072 = vmul.f32 %v1050, 16.0
      %v1073 = vsel %vm1071, -0.0, %v1072
      %v1074 = vsel %vm1070, nan, %v1073
    $region60: #{tpu_custom_call.1} parent=1
      #allocation39 [shape = 'u8[4096]{0}', space=vmem, size = 0x1000, scoped, tag = 'scoped memory for tpu_custom_call.1']
      %1075 = vst [vmem:[#allocation39] sm:$0xff] %v213
      %s1076 = scalar_lea.vmem [#allocation39], 4
      %v1077 = vld [vmem:[%s1076] sm:$0x3]
      %v1078 = vunpack.c.0.f8e4m3b11 %v1077
      %v1079 = vunpack.c.1.f8e4m3b11 %v1077
      %v1080 = vunpack.c.2.f8e4m3b11 %v1077
      %v1081 = vunpack.c.3.f8e4m3b11 %v1077
      %v1082 = vand.u32 2147483647, %v1078
      %vm1083 = vcmp.gt.f32.partialorder %v1082, 29.0
      %vm1084 = vcmp.ne.f32.partialorder %v1078, %v1078
      %v1085 = vmul.f32 %v1078, 16.0
      %v1086 = vsel %vm1084, -0.0, %v1085
      %v1087 = vsel %vm1083, nan, %v1086
      %v1088 = vand.u32 2147483647, %v1079
      %vm1089 = vcmp.gt.f32.partialorder %v1088, 29.0
      %vm1090 = vcmp.ne.f32.partialorder %v1079, %v1079
      %v1091 = vmul.f32 %v1079, 16.0
      %v1092 = vsel %vm1090, -0.0, %v1091
      %v1093 = vsel %vm1089, nan, %v1092
      %v1094 = vand.u32 2147483647, %v1080
      %vm1095 = vcmp.gt.f32.partialorder %v1094, 29.0
      %vm1096 = vcmp.ne.f32.partialorder %v1080, %v1080
      %v1097 = vmul.f32 %v1080, 16.0
      %v1098 = vsel %vm1096, -0.0, %v1097
      %v1099 = vsel %vm1095, nan, %v1098
      %v1100 = vand.u32 2147483647, %v1081
      %vm1101 = vcmp.gt.f32.partialorder %v1100, 29.0
      %vm1102 = vcmp.ne.f32.partialorder %v1081, %v1081
      %v1103 = vmul.f32 %v1081, 16.0
      %v1104 = vsel %vm1102, -0.0, %v1103
      %v1105 = vsel %vm1101, nan, %v1104
    $region61: #{tpu_custom_call.1} parent=1
      #allocation40 [shape = 'u8[4096]{0}', space=vmem, size = 0x1000, scoped, tag = 'scoped memory for tpu_custom_call.1']
      %1106 = vst [vmem:[#allocation40] sm:$0xff] %v214
      %s1107 = scalar_lea.vmem [#allocation40], 4
      %v1108 = vld [vmem:[%s1107] sm:$0x3]
      %v1109 = vunpack.c.0.f8e4m3b11 %v1108
      %v1110 = vunpack.c.1.f8e4m3b11 %v1108
      %v1111 = vunpack.c.2.f8e4m3b11 %v1108
      %v1112 = vunpack.c.3.f8e4m3b11 %v1108
      %v1113 = vand.u32 2147483647, %v1109
      %vm1114 = vcmp.gt.f32.partialorder %v1113, 29.0
      %vm1115 = vcmp.ne.f32.partialorder %v1109, %v1109
      %v1116 = vmul.f32 %v1109, 16.0
      %v1117 = vsel %vm1115, -0.0, %v1116
      %v1118 = vsel %vm1114, nan, %v1117
      %v1119 = vand.u32 2147483647, %v1110
      %vm1120 = vcmp.gt.f32.partialorder %v1119, 29.0
      %vm1121 = vcmp.ne.f32.partialorder %v1110, %v1110
      %v1122 = vmul.f32 %v1110, 16.0
      %v1123 = vsel %vm1121, -0.0, %v1122
      %v1124 = vsel %vm1120, nan, %v1123
      %v1125 = vand.u32 2147483647, %v1111
      %vm1126 = vcmp.gt.f32.partialorder %v1125, 29.0
      %vm1127 = vcmp.ne.f32.partialorder %v1111, %v1111
      %v1128 = vmul.f32 %v1111, 16.0
      %v1129 = vsel %vm1127, -0.0, %v1128
      %v1130 = vsel %vm1126, nan, %v1129
      %v1131 = vand.u32 2147483647, %v1112
      %vm1132 = vcmp.gt.f32.partialorder %v1131, 29.0
      %vm1133 = vcmp.ne.f32.partialorder %v1112, %v1112
      %v1134 = vmul.f32 %v1112, 16.0
      %v1135 = vsel %vm1133, -0.0, %v1134
      %v1136 = vsel %vm1132, nan, %v1135
    $region62: #{tpu_custom_call.1} parent=1
      #allocation41 [shape = 'u8[4096]{0}', space=vmem, size = 0x1000, scoped, tag = 'scoped memory for tpu_custom_call.1']
      %1137 = vst [vmem:[#allocation41] sm:$0xff] %v213
      %s1138 = scalar_lea.vmem [#allocation41], 6
      %v1139 = vld [vmem:[%s1138] sm:$0x3]
      %v1140 = vunpack.c.0.f8e4m3b11 %v1139
      %v1141 = vunpack.c.1.f8e4m3b11 %v1139
      %v1142 = vunpack.c.2.f8e4m3b11 %v1139
      %v1143 = vunpack.c.3.f8e4m3b11 %v1139
      %v1144 = vand.u32 2147483647, %v1140
      %vm1145 = vcmp.gt.f32.partialorder %v1144, 29.0
      %vm1146 = vcmp.ne.f32.partialorder %v1140, %v1140
      %v1147 = vmul.f32 %v1140, 16.0
      %v1148 = vsel %vm1146, -0.0, %v1147
      %v1149 = vsel %vm1145, nan, %v1148
      %v1150 = vand.u32 2147483647, %v1141
      %vm1151 = vcmp.gt.f32.partialorder %v1150, 29.0
      %vm1152 = vcmp.ne.f32.partialorder %v1141, %v1141
      %v1153 = vmul.f32 %v1141, 16.0
      %v1154 = vsel %vm1152, -0.0, %v1153
      %v1155 = vsel %vm1151, nan, %v1154
      %v1156 = vand.u32 2147483647, %v1142
      %vm1157 = vcmp.gt.f32.partialorder %v1156, 29.0
      %vm1158 = vcmp.ne.f32.partialorder %v1142, %v1142
      %v1159 = vmul.f32 %v1142, 16.0
      %v1160 = vsel %vm1158, -0.0, %v1159
      %v1161 = vsel %vm1157, nan, %v1160
      %v1162 = vand.u32 2147483647, %v1143
      %vm1163 = vcmp.gt.f32.partialorder %v1162, 29.0
      %vm1164 = vcmp.ne.f32.partialorder %v1143, %v1143
      %v1165 = vmul.f32 %v1143, 16.0
      %v1166 = vsel %vm1164, -0.0, %v1165
      %v1167 = vsel %vm1163, nan, %v1166
    $region63: #{tpu_custom_call.1} parent=1
      #allocation42 [shape = 'u8[4096]{0}', space=vmem, size = 0x1000, scoped, tag = 'scoped memory for tpu_custom_call.1']
      %1168 = vst [vmem:[#allocation42] sm:$0xff] %v214
      %s1169 = scalar_lea.vmem [#allocation42], 6
      %v1170 = vld [vmem:[%s1169] sm:$0x3]
      %v1171 = vunpack.c.0.f8e4m3b11 %v1170
      %v1172 = vunpack.c.1.f8e4m3b11 %v1170
      %v1173 = vunpack.c.2.f8e4m3b11 %v1170
      %v1174 = vunpack.c.3.f8e4m3b11 %v1170
      %v1175 = vand.u32 2147483647, %v1171
      %vm1176 = vcmp.gt.f32.partialorder %v1175, 29.0
      %vm1177 = vcmp.ne.f32.partialorder %v1171, %v1171
      %v1178 = vmul.f32 %v1171, 16.0
      %v1179 = vsel %vm1177, -0.0, %v1178
      %v1180 = vsel %vm1176, nan, %v1179
      %v1181 = vand.u32 2147483647, %v1172
      %vm1182 = vcmp.gt.f32.partialorder %v1181, 29.0
      %vm1183 = vcmp.ne.f32.partialorder %v1172, %v1172
      %v1184 = vmul.f32 %v1172, 16.0
      %v1185 = vsel %vm1183, -0.0, %v1184
      %v1186 = vsel %vm1182, nan, %v1185
      %v1187 = vand.u32 2147483647, %v1173
      %vm1188 = vcmp.gt.f32.partialorder %v1187, 29.0
      %vm1189 = vcmp.ne.f32.partialorder %v1173, %v1173
      %v1190 = vmul.f32 %v1173, 16.0
      %v1191 = vsel %vm1189, -0.0, %v1190
      %v1192 = vsel %vm1188, nan, %v1191
      %v1193 = vand.u32 2147483647, %v1174
      %vm1194 = vcmp.gt.f32.partialorder %v1193, 29.0
      %vm1195 = vcmp.ne.f32.partialorder %v1174, %v1174
      %v1196 = vmul.f32 %v1174, 16.0
      %v1197 = vsel %vm1195, -0.0, %v1196
      %v1198 = vsel %vm1194, nan, %v1197
    %v1199 = vpack.c.bf16 %v287, %v226
    %v1200 = vpack.c.bf16 %v318, %v256
    %v1201 = vpack.c.bf16 %v411, %v349
    %v1202 = vpack.c.bf16 %v442, %v380
    %v1203 = vpack.c.bf16 %v533, %v472
    %v1204 = vpack.c.bf16 %v564, %v502
    %v1205 = vpack.c.bf16 %v657, %v595
    %v1206 = vpack.c.bf16 %v688, %v626
    %v1207 = vpack.c.bf16 %v779, %v718
    %v1208 = vpack.c.bf16 %v810, %v748
    %v1209 = vpack.c.bf16 %v903, %v841
    %v1210 = vpack.c.bf16 %v934, %v872
    %v1211 = vpack.c.bf16 %v1025, %v964
    %v1212 = vpack.c.bf16 %v1056, %v994
    %v1213 = vpack.c.bf16 %v1149, %v1087
    %v1214 = vpack.c.bf16 %v1180, %v1118
    %1215 = vmatpush.bf16.msra.mxu0 %v1213
    %1216 = vmatpush.bf16.msra.mxu0 %v1211
    %1217 = vmatpush.bf16.msra.mxu0 %v1209
    %1218 = vmatpush.bf16.msra.mxu0 %v1207
    %1219 = vmatpush.bf16.msra.mxu0 %v1205
    %1220 = vmatpush.bf16.msra.mxu0 %v1203
    %1221 = vmatpush.bf16.msra.mxu0 %v1201
    %1222 = vmatpush.bf16.msra.mxu0 %v1199
    %1223 = vmatmul.bf16.gmra.mxu0 %v206
    %v1224 = vpop.f32.mrf.mxu0
    %v1225 = vadd.f32 0.0, %v1224
    %v1226 = vpop.f32.mrf.mxu0
    %v1227 = vadd.f32 0.0, %v1226
    %1228 = vdwg.mxu0
    %1229 = vmatpush.bf16.msra.mxu0 %v1214
    %1230 = vmatpush.bf16.msra.mxu0 %v1212
    %1231 = vmatpush.bf16.msra.mxu0 %v1210
    %1232 = vmatpush.bf16.msra.mxu0 %v1208
    %1233 = vmatpush.bf16.msra.mxu0 %v1206
    %1234 = vmatpush.bf16.msra.mxu0 %v1204
    %1235 = vmatpush.bf16.msra.mxu0 %v1202
    %1236 = vmatpush.bf16.msra.mxu0 %v1200
    %1237 = vmatmul.bf16.gmra.mxu0 %v206
    %v1238 = vpop.f32.mrf.mxu0
    %v1239 = vadd.f32 0.0, %v1238
    %v1240 = vpop.f32.mrf.mxu0
    %v1241 = vadd.f32 0.0, %v1240
    %1242 = vdwg.mxu0
    %v1243 = vmul.f32 %v1225, %v86
    %v1244 = vmul.f32 %v1239, %v86
    %v1245 = vmul.f32 %v1227, %v87
    %v1246 = vmul.f32 %v1241, %v87
    %v1247 = vld [vmem:[#allocation7] sm:$0x3]
    %v1249 = vperm.slane %v1247, 0
    %v1250 = vperm.slane %v1247, 1
    %v1253 = vmul.f32 %v1243, %v1249
    %v1254 = vmul.f32 %v1244, %v1250
    %v1255 = vmul.f32 %v1245, %v1249
    %v1256 = vmul.f32 %v1246, %v1250
    %v1257 = vld [vmem:[%s3] sm:$0x3]
    %v1258 = vunpack.c.l.bf16 %v1257
    %v1260 = vperm.slane %v1258, 0
    %v1261 = vperm.slane %v1258, 2
    %v1264 = vperm.slane %v1260, 0
    %v1265 = vperm.slane %v1261, 0
    %v1266 = vadd.f32 %v1253, %v1264
    %v1267 = vadd.f32 %v1254, %v1265
    %v1268 = vadd.f32 %v1255, %v1264
    %v1269 = vadd.f32 %v1256, %v1265
    %v1270 = vpack.c.bf16 %v1267, %v1266
    %v1271 = vpack.c.bf16 %v1269, %v1268
    %1272 = vst [vmem:[#allocation8] sm:$0xff] %v1270
    %1273 = vst [vmem:[#allocation8 + $0x8] sm:$0xff] %v1271
    // Predicated region
    $region64: #{tpu_custom_call.1} parent=1 // pred_check
      _
    $region65: #{tpu_custom_call.1} parent=1 // pred_check_branch
      %1275 = sbr.rel (0) target = $region67
    $region66: #{tpu_custom_call.1} parent=1 // pred_region
      %1277 = vsyncadd [#allocation4], 0
      %s1278 = sshll.u32 [#allocation8], 4
      %s1279 = int_to_ptr.vmem [resolvable:$true] %s1278
      %s1280 = sshll.u32 %s4, 4
      %s1281 = int_to_ptr.hbm [resolvable:$true] %s1280
      %1286 = dma.vmem_to_hbm [thread:$0]  %s1279, 256, %s1281, [#allocation4], 128, 128, 8
    $region67: #{tpu_custom_call.1} parent=1 // pred_fallthru
      _
    // Predicated region
    $region68: #{tpu_custom_call.1} parent=1 // pred_check
      _
    $region69: #{tpu_custom_call.1} parent=1 // pred_check_branch
      %1288 = sbr.rel (0) target = $region71
    $region70: #{tpu_custom_call.1} parent=1 // pred_region
      %1290 = dma.done [#allocation4], 256
    $region71: #{tpu_custom_call.1} parent=1 // pred_fallthru
      _
    %1291 = vsyncpa [#allocation3], 1
    %1292 = vsyncpa [#allocation6], 1
    %1293 = vsyncpa [#allocation4], 1

</llo_original>
